<compile_context>
chip_gen: v5e
topology: v5e:2x2
jax: 0.10.0
libtpu: 0.0.40
codegen_flags: <defaults>
</compile_context>

<pallas_src>
import math
import functools
import numpy as np
import jax
import jax.numpy as jnp
from jax import lax
from jax.experimental import pallas as pl
from jax.experimental.pallas import tpu as pltpu

NEG_INF = -1e30
LN_EPS = 1e-5
COMPUTE_DTYPE = jnp.bfloat16     # matmul operand dtype; accumulation is f32


def _layernorm(x, w, b):
    # x: [S, D] f32, w/b: [1, D]; biased variance, eps=1e-5 (PyTorch LayerNorm)
    mu = jnp.mean(x, axis=-1, keepdims=True)
    xc = x - mu
    var = jnp.mean(xc * xc, axis=-1, keepdims=True)
    return xc * lax.rsqrt(var + LN_EPS) * w + b


# --------------------------- encoder (layer-resident) ---------------------------
def _encoder_kernel(x_ref,
                    wqkv_ref, bqkv_ref, wo_ref, bo_ref, ln1w_ref, ln1b_ref,
                    w1_ref, b1_ref, w2_ref, b2_ref, ln2w_ref, ln2b_ref,
                    out_ref, *, num_heads):
    l = pl.program_id(0)

    # out_ref (constant block index across the layer axis) is the residual carry.
    @pl.when(l == 0)
    def _():
        out_ref[...] = x_ref[...]

    x = out_ref[...]                               # [S, D] f32 residual stream
    S, D = x.shape
    H = num_heads
    dh = D // H
    cd = COMPUTE_DTYPE

    # ---- self attention -----------------------------------------------------
    qkv = jnp.dot(x.astype(cd), wqkv_ref[0],       # [S, 3D], f32 accumulation
                  preferred_element_type=jnp.float32) + bqkv_ref[0]
    scale = 1.0 / math.sqrt(dh)
    q = (qkv[:, 0:D] * scale).astype(cd)           # scale folded into q (f32) once
    k = qkv[:, D:2 * D].astype(cd)
    v = qkv[:, 2 * D:3 * D].astype(cd)

    # causal mask built in-kernel (iota + compare, no resident SxS input)
    row = lax.broadcasted_iota(jnp.int32, (S, S), 0)
    col = lax.broadcasted_iota(jnp.int32, (S, S), 1)
    mask = jnp.where(col > row, jnp.float32(NEG_INF), jnp.float32(0.0))

    # TODO(synk): at realistic S/D use a flash-style TQ/TK tiling and route heads
    # through a head-batched [H,S,dh] layout / leading grid axis so the MXU
    # contraction dim is not dh=8; fine at this toy size.
    heads = []
    for h in range(H):                             # static unrolled per-head loop
        lo = h * dh
        qh = q[:, lo:lo + dh]
        kh = k[:, lo:lo + dh]
        vh = v[:, lo:lo + dh]
        sc = lax.dot_general(qh, kh, (((1,), (1,)), ((), ())),
                             preferred_element_type=jnp.float32) + mask
        m = jnp.max(sc, axis=-1, keepdims=True)    # softmax stats stay f32
        p = jnp.exp(sc - m)
        p = p * pl.reciprocal(jnp.sum(p, axis=-1, keepdims=True), approx=True)
        heads.append(jnp.dot(p.astype(cd), vh, preferred_element_type=jnp.float32))
    attn = jnp.concatenate(heads, axis=-1)         # [S, D] f32, stays in vregs

    # single merged out-projection matmul over all heads
    attn = jnp.dot(attn.astype(cd), wo_ref[0],
                   preferred_element_type=jnp.float32) + bo_ref[0]

    # dropout1 is identity in eval mode
    x = _layernorm(x + attn, ln1w_ref[0], ln1b_ref[0])

    # ---- feed-forward -------------------------------------------------------
    # TODO(synk): at realistic D/Dff tile W1/W2 over Dff chunks (nested
    # emit_pipeline or extra grid axis) so the double-buffered layer weights fit
    # v7x's 64 MiB VMEM.
    h1 = jnp.dot(x.astype(cd), w1_ref[0],
                 preferred_element_type=jnp.float32) + b1_ref[0]
    h1 = jnp.maximum(h1, 0.0)                      # ReLU (default activation)
    ff = jnp.dot(h1.astype(cd), w2_ref[0],
                 preferred_element_type=jnp.float32) + b2_ref[0]

    out_ref[...] = _layernorm(x + ff, ln2w_ref[0], ln2b_ref[0])


# ------------- LM head (vocab-tiled, online LSE, single HBM write) -------------
def _lm_head_kernel(x_ref, w_ref, b_ref, out_ref, m_sc, s_sc, *, vocab_tile):
    j = pl.program_id(0)

    @pl.when(j == 0)
    def _():
        m_sc[...] = jnp.full_like(m_sc, NEG_INF)
        s_sc[...] = jnp.zeros_like(s_sc)

    lt = jnp.dot(x_ref[...].astype(COMPUTE_DTYPE), w_ref[...],
                 preferred_element_type=jnp.float32) + b_ref[...]

    # out_ref is the full [S, Vp] slab, resident across vocab tiles (flushed once).
    # TODO(synk): at large S*Vp switch to a 2-pass recompute grid instead of a
    # VMEM-resident output slab (check against 64 MiB on v7x).
    col = pl.multiple_of(j * vocab_tile, vocab_tile)
    out_ref[:, pl.ds(col, vocab_tile)] = lt        # lane-dense 256-wide store

    m_prev = m_sc[...]
    m_new = jnp.maximum(m_prev, jnp.max(lt, axis=-1, keepdims=True))
    s_sc[...] = (jnp.exp(m_prev - m_new) * s_sc[...]
                 + jnp.sum(jnp.exp(lt - m_new), axis=-1, keepdims=True))
    m_sc[...] = m_new

    @pl.when(j == pl.num_programs(0) - 1)
    def _():
        out_ref[...] = out_ref[...] - (m_sc[...] + jnp.log(s_sc[...]))


# --------------------------- wrapper ---------------------------
def prepare_params(params, vocab_tile=256):
    """Host-side (one-time) weight prep: transpose to [in,out] layouts, cast the
    big matrices to bf16, pad the LM head to a lane-dense vocab multiple."""
    cd = COMPUTE_DTYPE
    V, D = params["wout"].shape
    Vp = ((V + vocab_tile - 1) // vocab_tile) * vocab_tile
    prep = {
        "wqkvT": jnp.transpose(params["wqkv"], (0, 2, 1)).astype(cd),   # [L, D, 3D]
        "woT":   jnp.transpose(params["wo"],   (0, 2, 1)).astype(cd),   # [L, D, D]
        "w1T":   jnp.transpose(params["w1"],   (0, 2, 1)).astype(cd),   # [L, D, Dff]
        "w2T":   jnp.transpose(params["w2"],   (0, 2, 1)).astype(cd),   # [L, Dff, D]
        "woutT": jnp.pad(params["wout"].T.astype(cd), ((0, 0), (0, Vp - V))),  # [D, Vp]
        "bout":  jnp.pad(params["bout"], ((0, 0), (0, Vp - V)),
                         constant_values=NEG_INF),                       # [1, Vp]
        "vocab_size": V, "padded_vocab": Vp, "vocab_tile": vocab_tile,
    }
    for name in ("bqkv", "bo", "b1", "b2", "ln1w", "ln1b", "ln2w", "ln2b",
                 "emb_w", "pos_w"):
        prep[name] = params[name]                   # kept f32 (VPU / bias adds)
    return prep


def _vmem_capacity_bytes(default=64 * 1024 * 1024):
    try:
        return int(getattr(pltpu.get_tpu_info(), "vmem_capacity_bytes", default))
    except Exception:
        return default


def transformer_lm_forward(src, prep, *, num_heads):
    D = prep["emb_w"].shape[1]
    S = src.shape[0]
    L = prep["wqkvT"].shape[0]
    Dff = prep["w1T"].shape[2]
    V, Vp, TV = prep["vocab_size"], prep["padded_vocab"], prep["vocab_tile"]
    assert D % num_heads == 0

    # glue: embedding gather + positional add (sqrt(d_model) scaling like PyTorch)
    x = (prep["emb_w"][src] * math.sqrt(D) + prep["pos_w"][:S]).astype(jnp.float32)
    # TODO(synk): dropout layers are identity (eval mode); no RNG dropout in-kernel.
    # TODO(synk): for v7x add an S-parallel (or batch) grid axis to use the second
    # TensorCore; at D=32 lanes are also under-filled (no D pad to keep LayerNorm
    # semantics exact).

    kern = functools.partial(_encoder_kernel, num_heads=num_heads)

    def per_layer(shape):
        return pl.BlockSpec((1,) + shape, lambda l: (l, 0, 0))

    # explicit VMEM budget: double-buffered per-layer weights + resident activations,
    # capped below the chip's physical VMEM (64 MiB/TC on v7x).
    wbytes = (D * 3 * D + D * D + 2 * D * Dff) * jnp.dtype(COMPUTE_DTYPE).itemsize
    bbytes = (3 * D + D + Dff + D + 4 * D) * 4
    abytes = (2 * S * D + 3 * S * D + S * Dff + S * S) * 4
    required = 2 * (wbytes + bbytes) + abytes + (8 << 20)
    vmem_cap = _vmem_capacity_bytes()
    vmem_limit = int(min(vmem_cap - (8 << 20), max(32 << 20, required)))

    encoded = pl.pallas_call(
        kern,
        out_shape=jax.ShapeDtypeStruct((S, D), jnp.float32),
        grid_spec=pltpu.PrefetchScalarGridSpec(
            num_scalar_prefetch=0,
            grid=(L,),
            in_specs=[
                pl.BlockSpec((S, D), lambda l: (0, 0)),           # x (init residual)
                per_layer((D, 3 * D)), per_layer((1, 3 * D)),     # WqkvT, bqkv
                per_layer((D, D)), per_layer((1, D)),             # WoT,  bo
                per_layer((1, D)), per_layer((1, D)),             # ln1 w, b
                per_layer((D, Dff)), per_layer((1, Dff)),         # W1T,  b1
                per_layer((Dff, D)), per_layer((1, D)),           # W2T,  b2
                per_layer((1, D)), per_layer((1, D)),             # ln2 w, b
            ],
            out_specs=pl.BlockSpec((S, D), lambda l: (0, 0)),     # residual carry
        ),
        input_output_aliases={0: 0},                              # x buffer -> output
        compiler_params=pltpu.CompilerParams(
            dimension_semantics=("arbitrary",),
            vmem_limit_bytes=vmem_limit),
    )(x, prep["wqkvT"], prep["bqkv"], prep["woT"], prep["bo"],
      prep["ln1w"], prep["ln1b"], prep["w1T"], prep["b1"],
      prep["w2T"], prep["b2"], prep["ln2w"], prep["ln2b"])

    # ---- LM head: vocab-tiled logits, online LSE, in-place normalization ----
    nv = Vp // TV
    if nv >= 3:
        # weight streaming is HBM-bound at realistic vocab; add a third buffer
        w_spec = pl.BlockSpec((D, TV), lambda j: (0, j), pipeline_mode=pl.Buffered(3))
    else:
        w_spec = pl.BlockSpec((D, TV), lambda j: (0, j))

    log_probs = pl.pallas_call(
        functools.partial(_lm_head_kernel, vocab_tile=TV),
        out_shape=jax.ShapeDtypeStruct((S, Vp), jnp.float32),
        grid=(nv,),
        in_specs=[pl.BlockSpec((S, D), lambda j: (0, 0)),
                  w_spec,
                  pl.BlockSpec((1, TV), lambda j: (0, j))],
        out_specs=pl.BlockSpec((S, Vp), lambda j: (0, 0)),        # resident slab
        scratch_shapes=[pltpu.VMEM((S, 1), jnp.float32),
                        pltpu.VMEM((S, 1), jnp.float32)],
        compiler_params=pltpu.CompilerParams(
            dimension_semantics=("arbitrary",)),
    )(encoded, prep["woutT"], prep["bout"])

    return log_probs[:, :V]


# ----------------------------- reference (plain JAX) -----------------------------
def reference_forward(src, params, num_heads, compute_dtype=COMPUTE_DTYPE):
    """Plain-JAX reference of the PyTorch module, mirroring the kernel's mixed
    precision (bf16 matmul operands, f32 accumulation / LayerNorm / softmax)."""
    D = params["emb_w"].shape[1]
    S = src.shape[0]
    x = (params["emb_w"][src] * math.sqrt(D) + params["pos_w"][:S]).astype(jnp.float32)
    L = params["wqkv"].shape[0]
    H = num_heads
    dh = D // H
    cd = compute_dtype

    def mm(a, w_torch):   # a: [.., K] f32, w_torch: [out, K] (PyTorch layout)
        return jnp.dot(a.astype(cd), w_torch.astype(cd).T,
                       preferred_element_type=jnp.float32)

    col = np.arange(S)[None, :]
    row = np.arange(S)[:, None]
    mask = jnp.where(col > row, NEG_INF, 0.0).astype(jnp.float32)
    for l in range(L):
        qkv = mm(x, params["wqkv"][l]) + params["bqkv"][l, 0]
        q, k, v = qkv[:, :D], qkv[:, D:2 * D], qkv[:, 2 * D:]
        heads = []
        for h in range(H):
            qh, kh, vh = (t[:, h * dh:(h + 1) * dh] for t in (q, k, v))
            qh = (qh / math.sqrt(dh)).astype(cd)
            sc = jnp.dot(qh, kh.astype(cd).T,
                         preferred_element_type=jnp.float32) + mask
            p = jax.nn.softmax(sc, axis=-1)
            heads.append(jnp.dot(p.astype(cd), vh.astype(cd),
                                 preferred_element_type=jnp.float32))
        attn = jnp.concatenate(heads, axis=-1)
        attn_out = mm(attn, params["wo"][l]) + params["bo"][l, 0]
        x = _layernorm(x + attn_out, params["ln1w"][l, 0], params["ln1b"][l, 0])
        h1 = jnp.maximum(mm(x, params["w1"][l]) + params["b1"][l, 0], 0.0)
        ff = mm(h1, params["w2"][l]) + params["b2"][l, 0]
        x = _layernorm(x + ff, params["ln2w"][l, 0], params["ln2b"][l, 0])
    logits = mm(x, params["wout"]) + params["bout"][0]
    return jax.nn.log_softmax(logits, axis=-1)


# ----------------------------- parameter init -----------------------------
def xavier_uniform(key, shape):
    fan_out, fan_in = shape[-2], shape[-1]
    bound = math.sqrt(6.0 / (fan_in + fan_out))
    return jax.random.uniform(key, shape, jnp.float32, -bound, bound)


def init_params(key, *, d_model, num_layers, d_ff, vocab_size, max_seq_len):
    keys = jax.random.split(key, 8 + 4 * num_layers)
    ki = iter(keys)
    p = {
        "emb_w": xavier_uniform(next(ki), (vocab_size, d_model)),
        "pos_w": xavier_uniform(next(ki), (max_seq_len, d_model)),
        "wout": xavier_uniform(next(ki), (vocab_size, d_model)),
        "bout": jnp.zeros((1, vocab_size), jnp.float32),
    }
    wqkv, wo, w1, w2 = [], [], [], []
    for _ in range(num_layers):
        wqkv.append(xavier_uniform(next(ki), (3 * d_model, d_model)))
        wo.append(xavier_uniform(next(ki), (d_model, d_model)))
        w1.append(xavier_uniform(next(ki), (d_ff, d_model)))
        w2.append(xavier_uniform(next(ki), (d_model, d_ff)))
    L = num_layers
    p.update({
        "wqkv": jnp.stack(wqkv), "bqkv": jnp.zeros((L, 1, 3 * d_model), jnp.float32),
        "wo": jnp.stack(wo), "bo": jnp.zeros((L, 1, d_model), jnp.float32),
        "w1": jnp.stack(w1), "b1": jnp.zeros((L, 1, d_ff), jnp.float32),
        "w2": jnp.stack(w2), "b2": jnp.zeros((L, 1, d_model), jnp.float32),
        "ln1w": jnp.ones((L, 1, d_model), jnp.float32),
        "ln1b": jnp.zeros((L, 1, d_model), jnp.float32),
        "ln2w": jnp.ones((L, 1, d_model), jnp.float32),
        "ln2b": jnp.zeros((L, 1, d_model), jnp.float32),
    })
    return p


if __name__ == "__main__":
    d_model, num_heads, num_layers, d_ff = 32, 4, 2, 64
    vocab_size, max_seq_len, seq_len = 27, 20, 8

    key = jax.random.PRNGKey(0)
    pkey, skey = jax.random.split(key)
    params = init_params(pkey, d_model=d_model, num_layers=num_layers,
                         d_ff=d_ff, vocab_size=vocab_size, max_seq_len=max_seq_len)
    src = jax.random.randint(skey, (seq_len,), 0, vocab_size, dtype=jnp.int32)

    prep = prepare_params(params)
    out = transformer_lm_forward(src, prep, num_heads=num_heads)
    out = jax.block_until_ready(out)

    ref = jax.block_until_ready(reference_forward(src, params, num_heads))
    assert out.shape == (seq_len, vocab_size)
    np.testing.assert_allclose(np.asarray(out), np.asarray(ref), rtol=2e-2, atol=2e-2)
    print("KERNEL_OK")
</pallas_src>

<mosaic_0001>
module attributes {stable_mosaic.version = 11 : i64} {
  func.func @_encoder_kernel(%arg0: i32, %arg1: memref<8x32xf32, #tpu.memory_space<vmem>>, %arg2: memref<1x32x96xbf16, #tpu.memory_space<vmem>>, %arg3: memref<1x1x96xf32, #tpu.memory_space<vmem>>, %arg4: memref<1x32x32xbf16, #tpu.memory_space<vmem>>, %arg5: memref<1x1x32xf32, #tpu.memory_space<vmem>>, %arg6: memref<1x1x32xf32, #tpu.memory_space<vmem>>, %arg7: memref<1x1x32xf32, #tpu.memory_space<vmem>>, %arg8: memref<1x32x64xbf16, #tpu.memory_space<vmem>>, %arg9: memref<1x1x64xf32, #tpu.memory_space<vmem>>, %arg10: memref<1x64x32xbf16, #tpu.memory_space<vmem>>, %arg11: memref<1x1x32xf32, #tpu.memory_space<vmem>>, %arg12: memref<1x1x32xf32, #tpu.memory_space<vmem>>, %arg13: memref<1x1x32xf32, #tpu.memory_space<vmem>>, %arg14: memref<8x32xf32, #tpu.memory_space<vmem>>) attributes {dimension_semantics = [#tpu.dimension_semantics<arbitrary>], iteration_bounds = array<i64: 2>, scalar_prefetch = 0 : i64, scratch_operands = 0 : i64, tpu.core_type = #tpu.core_type<tc>, window_params = [{pipeline_mode = #tpu.pipeline_mode<synchronous>, transform_indices = @transform_0, window_bounds = array<i64: 8, 32>}, {transform_indices = @transform_1, window_bounds = array<i64: 1, 32, 96>}, {transform_indices = @transform_2, window_bounds = array<i64: 1, 1, 96>}, {transform_indices = @transform_3, window_bounds = array<i64: 1, 32, 32>}, {transform_indices = @transform_4, window_bounds = array<i64: 1, 1, 32>}, {transform_indices = @transform_5, window_bounds = array<i64: 1, 1, 32>}, {transform_indices = @transform_6, window_bounds = array<i64: 1, 1, 32>}, {transform_indices = @transform_7, window_bounds = array<i64: 1, 32, 64>}, {transform_indices = @transform_8, window_bounds = array<i64: 1, 1, 64>}, {transform_indices = @transform_9, window_bounds = array<i64: 1, 64, 32>}, {transform_indices = @transform_10, window_bounds = array<i64: 1, 1, 32>}, {transform_indices = @transform_11, window_bounds = array<i64: 1, 1, 32>}, {transform_indices = @transform_12, window_bounds = array<i64: 1, 1, 32>}, {pipeline_mode = #tpu.pipeline_mode<synchronous>, transform_indices = @transform_13, window_bounds = array<i64: 8, 32>}]} {
    %c0_i32 = arith.constant 0 : i32
    %0 = arith.cmpi eq, %arg0, %c0_i32 : i32
    %1 = arith.extui %0 : i1 to i32
    %c0_i32_0 = arith.constant 0 : i32
    %2 = arith.cmpi ne, %1, %c0_i32_0 : i32
    scf.if %2 {
      %c0_73 = arith.constant 0 : index
      %c0_74 = arith.constant 0 : index
      %172 = vector.load %arg1[%c0_73, %c0_74] : memref<8x32xf32, #tpu.memory_space<vmem>>, vector<8x32xf32>
      %c0_75 = arith.constant 0 : index
      %c0_76 = arith.constant 0 : index
      %173 = vector.load %arg14[%c0_75, %c0_76] : memref<8x32xf32, #tpu.memory_space<vmem>>, vector<8x32xf32>
      tpu.vector_store %arg14[%c0_75, %c0_76], %172 {strides = array<i32>} : memref<8x32xf32, #tpu.memory_space<vmem>>, vector<8x32xf32>,
    } else {
    }
    %c0 = arith.constant 0 : index
    %c0_1 = arith.constant 0 : index
    %3 = vector.load %arg14[%c0, %c0_1] : memref<8x32xf32, #tpu.memory_space<vmem>>, vector<8x32xf32>
    %4 = arith.truncf %3 : vector<8x32xf32> to vector<8x32xbf16>
    %c0_2 = arith.constant 0 : index
    %c0_3 = arith.constant 0 : index
    %c0_4 = arith.constant 0 : index
    %5 = vector.load %arg2[%c0_2, %c0_3, %c0_4] : memref<1x32x96xbf16, #tpu.memory_space<vmem>>, vector<1x32x96xbf16>
    %6 = vector.shape_cast %5 : vector<1x32x96xbf16> to vector<32x96xbf16>
    %cst = arith.constant dense<0.000000e+00> : vector<8x96xf32>
    %7 = tpu.matmul %4, %6, %cst {dimension_numbers = #tpu.dot_dimension_numbers<[1], [0], [0], [1], [0, 0, 1, 1], [], []>} : vector<8x32xbf16>, vector<32x96xbf16>, vector<8x96xf32> -> vector<8x96xf32>
    %c0_5 = arith.constant 0 : index
    %c0_6 = arith.constant 0 : index
    %c0_7 = arith.constant 0 : index
    %8 = vector.load %arg3[%c0_5, %c0_6, %c0_7] : memref<1x1x96xf32, #tpu.memory_space<vmem>>, vector<1x1x96xf32>
    %9 = vector.shape_cast %8 : vector<1x1x96xf32> to vector<1x96xf32>
    %10 = vector.broadcast %9 : vector<1x96xf32> to vector<8x96xf32>
    %11 = arith.addf %7, %10 : vector<8x96xf32>
    %12 = vector.extract_strided_slice %11 {offsets = [0, 0], sizes = [8, 32], strides = [1, 1]} : vector<8x96xf32> to vector<8x32xf32>
    %cst_8 = arith.constant 0.353553385 : f32
    %13 = vector.broadcast %cst_8 : f32 to vector<8x32xf32>
    %14 = arith.mulf %12, %13 : vector<8x32xf32>
    %15 = arith.truncf %14 : vector<8x32xf32> to vector<8x32xbf16>
    %16 = vector.extract_strided_slice %11 {offsets = [0, 32], sizes = [8, 32], strides = [1, 1]} : vector<8x96xf32> to vector<8x32xf32>
    %17 = arith.truncf %16 : vector<8x32xf32> to vector<8x32xbf16>
    %18 = vector.extract_strided_slice %11 {offsets = [0, 64], sizes = [8, 32], strides = [1, 1]} : vector<8x96xf32> to vector<8x32xf32>
    %19 = arith.truncf %18 : vector<8x32xf32> to vector<8x32xbf16>
    %20 = tpu.iota {dimensions = array<i32: 0>} : vector<8x8xi32>
    %21 = tpu.iota {dimensions = array<i32: 1>} : vector<8x8xi32>
    %22 = arith.cmpi sgt, %21, %20 : vector<8x8xi32>
    %cst_9 = arith.constant -1.000000e+30 : f32
    %cst_10 = arith.constant 0.000000e+00 : f32
    %23 = vector.broadcast %cst_9 : f32 to vector<8x8xf32>
    %24 = vector.broadcast %cst_10 : f32 to vector<8x8xf32>
    %25 = arith.select %22, %23, %24 : vector<8x8xi1>, vector<8x8xf32>
    %26 = vector.extract_strided_slice %15 {offsets = [0, 0], sizes = [8, 8], strides = [1, 1]} : vector<8x32xbf16> to vector<8x8xbf16>
    %27 = vector.extract_strided_slice %17 {offsets = [0, 0], sizes = [8, 8], strides = [1, 1]} : vector<8x32xbf16> to vector<8x8xbf16>
    %28 = vector.extract_strided_slice %19 {offsets = [0, 0], sizes = [8, 8], strides = [1, 1]} : vector<8x32xbf16> to vector<8x8xbf16>
    %cst_11 = arith.constant dense<0.000000e+00> : vector<8x8xf32>
    %29 = tpu.matmul %26, %27, %cst_11 {dimension_numbers = #tpu.dot_dimension_numbers<[1], [1], [0], [0], [0, 0, 1, 0], [], []>} : vector<8x8xbf16>, vector<8x8xbf16>, vector<8x8xf32> -> vector<8x8xf32>
    %30 = arith.addf %29, %25 : vector<8x8xf32>
    %cst_12 = arith.constant dense<0xFF800000> : vector<8xf32>
    %31 = vector.multi_reduction <maximumf>, %30, %cst_12 [1] : vector<8x8xf32> to vector<8xf32>
    %32 = vector.shape_cast %31 : vector<8xf32> to vector<8x1xf32>
    %33 = vector.broadcast %32 : vector<8x1xf32> to vector<8x8xf32>
    %34 = arith.subf %30, %33 : vector<8x8xf32>
    %35 = math.exp %34 : vector<8x8xf32>
    %cst_13 = arith.constant dense<0.000000e+00> : vector<8xf32>
    %36 = vector.multi_reduction <add>, %35, %cst_13 [1] : vector<8x8xf32> to vector<8xf32>
    %37 = vector.shape_cast %36 : vector<8xf32> to vector<8x1xf32>
    %38 = tpu.reciprocal %37 {approx = true} : vector<8x1xf32> -> vector<8x1xf32>
    %39 = vector.broadcast %38 : vector<8x1xf32> to vector<8x8xf32>
    %40 = arith.mulf %35, %39 : vector<8x8xf32>
    %41 = arith.truncf %40 : vector<8x8xf32> to vector<8x8xbf16>
    %cst_14 = arith.constant dense<0.000000e+00> : vector<8x8xf32>
    %42 = tpu.matmul %41, %28, %cst_14 {dimension_numbers = #tpu.dot_dimension_numbers<[1], [0], [0], [1], [0, 0, 1, 1], [], []>} : vector<8x8xbf16>, vector<8x8xbf16>, vector<8x8xf32> -> vector<8x8xf32>
    %43 = vector.extract_strided_slice %15 {offsets = [0, 8], sizes = [8, 8], strides = [1, 1]} : vector<8x32xbf16> to vector<8x8xbf16>
    %44 = vector.extract_strided_slice %17 {offsets = [0, 8], sizes = [8, 8], strides = [1, 1]} : vector<8x32xbf16> to vector<8x8xbf16>
    %45 = vector.extract_strided_slice %19 {offsets = [0, 8], sizes = [8, 8], strides = [1, 1]} : vector<8x32xbf16> to vector<8x8xbf16>
    %cst_15 = arith.constant dense<0.000000e+00> : vector<8x8xf32>
    %46 = tpu.matmul %43, %44, %cst_15 {dimension_numbers = #tpu.dot_dimension_numbers<[1], [1], [0], [0], [0, 0, 1, 0], [], []>} : vector<8x8xbf16>, vector<8x8xbf16>, vector<8x8xf32> -> vector<8x8xf32>
    %47 = arith.addf %46, %25 : vector<8x8xf32>
    %cst_16 = arith.constant dense<0xFF800000> : vector<8xf32>
    %48 = vector.multi_reduction <maximumf>, %47, %cst_16 [1] : vector<8x8xf32> to vector<8xf32>
    %49 = vector.shape_cast %48 : vector<8xf32> to vector<8x1xf32>
    %50 = vector.broadcast %49 : vector<8x1xf32> to vector<8x8xf32>
    %51 = arith.subf %47, %50 : vector<8x8xf32>
    %52 = math.exp %51 : vector<8x8xf32>
    %cst_17 = arith.constant dense<0.000000e+00> : vector<8xf32>
    %53 = vector.multi_reduction <add>, %52, %cst_17 [1] : vector<8x8xf32> to vector<8xf32>
    %54 = vector.shape_cast %53 : vector<8xf32> to vector<8x1xf32>
    %55 = tpu.reciprocal %54 {approx = true} : vector<8x1xf32> -> vector<8x1xf32>
    %56 = vector.broadcast %55 : vector<8x1xf32> to vector<8x8xf32>
    %57 = arith.mulf %52, %56 : vector<8x8xf32>
    %58 = arith.truncf %57 : vector<8x8xf32> to vector<8x8xbf16>
    %cst_18 = arith.constant dense<0.000000e+00> : vector<8x8xf32>
    %59 = tpu.matmul %58, %45, %cst_18 {dimension_numbers = #tpu.dot_dimension_numbers<[1], [0], [0], [1], [0, 0, 1, 1], [], []>} : vector<8x8xbf16>, vector<8x8xbf16>, vector<8x8xf32> -> vector<8x8xf32>
    %60 = vector.extract_strided_slice %15 {offsets = [0, 16], sizes = [8, 8], strides = [1, 1]} : vector<8x32xbf16> to vector<8x8xbf16>
    %61 = vector.extract_strided_slice %17 {offsets = [0, 16], sizes = [8, 8], strides = [1, 1]} : vector<8x32xbf16> to vector<8x8xbf16>
    %62 = vector.extract_strided_slice %19 {offsets = [0, 16], sizes = [8, 8], strides = [1, 1]} : vector<8x32xbf16> to vector<8x8xbf16>
    %cst_19 = arith.constant dense<0.000000e+00> : vector<8x8xf32>
    %63 = tpu.matmul %60, %61, %cst_19 {dimension_numbers = #tpu.dot_dimension_numbers<[1], [1], [0], [0], [0, 0, 1, 0], [], []>} : vector<8x8xbf16>, vector<8x8xbf16>, vector<8x8xf32> -> vector<8x8xf32>
    %64 = arith.addf %63, %25 : vector<8x8xf32>
    %cst_20 = arith.constant dense<0xFF800000> : vector<8xf32>
    %65 = vector.multi_reduction <maximumf>, %64, %cst_20 [1] : vector<8x8xf32> to vector<8xf32>
    %66 = vector.shape_cast %65 : vector<8xf32> to vector<8x1xf32>
    %67 = vector.broadcast %66 : vector<8x1xf32> to vector<8x8xf32>
    %68 = arith.subf %64, %67 : vector<8x8xf32>
    %69 = math.exp %68 : vector<8x8xf32>
    %cst_21 = arith.constant dense<0.000000e+00> : vector<8xf32>
    %70 = vector.multi_reduction <add>, %69, %cst_21 [1] : vector<8x8xf32> to vector<8xf32>
    %71 = vector.shape_cast %70 : vector<8xf32> to vector<8x1xf32>
    %72 = tpu.reciprocal %71 {approx = true} : vector<8x1xf32> -> vector<8x1xf32>
    %73 = vector.broadcast %72 : vector<8x1xf32> to vector<8x8xf32>
    %74 = arith.mulf %69, %73 : vector<8x8xf32>
    %75 = arith.truncf %74 : vector<8x8xf32> to vector<8x8xbf16>
    %cst_22 = arith.constant dense<0.000000e+00> : vector<8x8xf32>
    %76 = tpu.matmul %75, %62, %cst_22 {dimension_numbers = #tpu.dot_dimension_numbers<[1], [0], [0], [1], [0, 0, 1, 1], [], []>} : vector<8x8xbf16>, vector<8x8xbf16>, vector<8x8xf32> -> vector<8x8xf32>
    %77 = vector.extract_strided_slice %15 {offsets = [0, 24], sizes = [8, 8], strides = [1, 1]} : vector<8x32xbf16> to vector<8x8xbf16>
    %78 = vector.extract_strided_slice %17 {offsets = [0, 24], sizes = [8, 8], strides = [1, 1]} : vector<8x32xbf16> to vector<8x8xbf16>
    %79 = vector.extract_strided_slice %19 {offsets = [0, 24], sizes = [8, 8], strides = [1, 1]} : vector<8x32xbf16> to vector<8x8xbf16>
    %cst_23 = arith.constant dense<0.000000e+00> : vector<8x8xf32>
    %80 = tpu.matmul %77, %78, %cst_23 {dimension_numbers = #tpu.dot_dimension_numbers<[1], [1], [0], [0], [0, 0, 1, 0], [], []>} : vector<8x8xbf16>, vector<8x8xbf16>, vector<8x8xf32> -> vector<8x8xf32>
    %81 = arith.addf %80, %25 : vector<8x8xf32>
    %cst_24 = arith.constant dense<0xFF800000> : vector<8xf32>
    %82 = vector.multi_reduction <maximumf>, %81, %cst_24 [1] : vector<8x8xf32> to vector<8xf32>
    %83 = vector.shape_cast %82 : vector<8xf32> to vector<8x1xf32>
    %84 = vector.broadcast %83 : vector<8x1xf32> to vector<8x8xf32>
    %85 = arith.subf %81, %84 : vector<8x8xf32>
    %86 = math.exp %85 : vector<8x8xf32>
    %cst_25 = arith.constant dense<0.000000e+00> : vector<8xf32>
    %87 = vector.multi_reduction <add>, %86, %cst_25 [1] : vector<8x8xf32> to vector<8xf32>
    %88 = vector.shape_cast %87 : vector<8xf32> to vector<8x1xf32>
    %89 = tpu.reciprocal %88 {approx = true} : vector<8x1xf32> -> vector<8x1xf32>
    %90 = vector.broadcast %89 : vector<8x1xf32> to vector<8x8xf32>
    %91 = arith.mulf %86, %90 : vector<8x8xf32>
    %92 = arith.truncf %91 : vector<8x8xf32> to vector<8x8xbf16>
    %cst_26 = arith.constant dense<0.000000e+00> : vector<8x8xf32>
    %93 = tpu.matmul %92, %79, %cst_26 {dimension_numbers = #tpu.dot_dimension_numbers<[1], [0], [0], [1], [0, 0, 1, 1], [], []>} : vector<8x8xbf16>, vector<8x8xbf16>, vector<8x8xf32> -> vector<8x8xf32>
    %94 = tpu.concatenate %42, %59, %76, %93 in 1 : vector<8x8xf32>, vector<8x8xf32>, vector<8x8xf32>, vector<8x8xf32> -> vector<8x32xf32>
    %95 = arith.truncf %94 : vector<8x32xf32> to vector<8x32xbf16>
    %c0_27 = arith.constant 0 : index
    %c0_28 = arith.constant 0 : index
    %c0_29 = arith.constant 0 : index
    %96 = vector.load %arg4[%c0_27, %c0_28, %c0_29] : memref<1x32x32xbf16, #tpu.memory_space<vmem>>, vector<1x32x32xbf16>
    %97 = vector.shape_cast %96 : vector<1x32x32xbf16> to vector<32x32xbf16>
    %cst_30 = arith.constant dense<0.000000e+00> : vector<8x32xf32>
    %98 = tpu.matmul %95, %97, %cst_30 {dimension_numbers = #tpu.dot_dimension_numbers<[1], [0], [0], [1], [0, 0, 1, 1], [], []>} : vector<8x32xbf16>, vector<32x32xbf16>, vector<8x32xf32> -> vector<8x32xf32>
    %c0_31 = arith.constant 0 : index
    %c0_32 = arith.constant 0 : index
    %c0_33 = arith.constant 0 : index
    %99 = vector.load %arg5[%c0_31, %c0_32, %c0_33] : memref<1x1x32xf32, #tpu.memory_space<vmem>>, vector<1x1x32xf32>
    %100 = vector.shape_cast %99 : vector<1x1x32xf32> to vector<1x32xf32>
    %101 = vector.broadcast %100 : vector<1x32xf32> to vector<8x32xf32>
    %102 = arith.addf %98, %101 : vector<8x32xf32>
    %103 = arith.addf %3, %102 : vector<8x32xf32>
    %c0_34 = arith.constant 0 : index
    %c0_35 = arith.constant 0 : index
    %c0_36 = arith.constant 0 : index
    %104 = vector.load %arg6[%c0_34, %c0_35, %c0_36] : memref<1x1x32xf32, #tpu.memory_space<vmem>>, vector<1x1x32xf32>
    %105 = vector.shape_cast %104 : vector<1x1x32xf32> to vector<1x32xf32>
    %c0_37 = arith.constant 0 : index
    %c0_38 = arith.constant 0 : index
    %c0_39 = arith.constant 0 : index
    %106 = vector.load %arg7[%c0_37, %c0_38, %c0_39] : memref<1x1x32xf32, #tpu.memory_space<vmem>>, vector<1x1x32xf32>
    %107 = vector.shape_cast %106 : vector<1x1x32xf32> to vector<1x32xf32>
    %cst_40 = arith.constant dense<0.000000e+00> : vector<8xf32>
    %108 = vector.multi_reduction <add>, %103, %cst_40 [1] : vector<8x32xf32> to vector<8xf32>
    %109 = vector.shape_cast %108 : vector<8xf32> to vector<8x1xf32>
    %cst_41 = arith.constant 3.200000e+01 : f32
    %110 = vector.broadcast %cst_41 : f32 to vector<8x1xf32>
    %111 = arith.divf %109, %110 : vector<8x1xf32>
    %112 = vector.broadcast %111 : vector<8x1xf32> to vector<8x32xf32>
    %113 = arith.subf %103, %112 : vector<8x32xf32>
    %114 = arith.mulf %113, %113 : vector<8x32xf32>
    %cst_42 = arith.constant dense<0.000000e+00> : vector<8xf32>
    %115 = vector.multi_reduction <add>, %114, %cst_42 [1] : vector<8x32xf32> to vector<8xf32>
    %116 = vector.shape_cast %115 : vector<8xf32> to vector<8x1xf32>
    %cst_43 = arith.constant 3.200000e+01 : f32
    %117 = vector.broadcast %cst_43 : f32 to vector<8x1xf32>
    %118 = arith.divf %116, %117 : vector<8x1xf32>
    %cst_44 = arith.constant 9.99999974E-6 : f32
    %119 = vector.broadcast %cst_44 : f32 to vector<8x1xf32>
    %120 = arith.addf %118, %119 : vector<8x1xf32>
    %121 = math.rsqrt %120 : vector<8x1xf32>
    %122 = vector.broadcast %121 : vector<8x1xf32> to vector<8x32xf32>
    %123 = arith.mulf %113, %122 : vector<8x32xf32>
    %124 = vector.broadcast %105 : vector<1x32xf32> to vector<8x32xf32>
    %125 = arith.mulf %123, %124 : vector<8x32xf32>
    %126 = vector.broadcast %107 : vector<1x32xf32> to vector<8x32xf32>
    %127 = arith.addf %125, %126 : vector<8x32xf32>
    %128 = arith.truncf %127 : vector<8x32xf32> to vector<8x32xbf16>
    %c0_45 = arith.constant 0 : index
    %c0_46 = arith.constant 0 : index
    %c0_47 = arith.constant 0 : index
    %129 = vector.load %arg8[%c0_45, %c0_46, %c0_47] : memref<1x32x64xbf16, #tpu.memory_space<vmem>>, vector<1x32x64xbf16>
    %130 = vector.shape_cast %129 : vector<1x32x64xbf16> to vector<32x64xbf16>
    %cst_48 = arith.constant dense<0.000000e+00> : vector<8x64xf32>
    %131 = tpu.matmul %128, %130, %cst_48 {dimension_numbers = #tpu.dot_dimension_numbers<[1], [0], [0], [1], [0, 0, 1, 1], [], []>} : vector<8x32xbf16>, vector<32x64xbf16>, vector<8x64xf32> -> vector<8x64xf32>
    %c0_49 = arith.constant 0 : index
    %c0_50 = arith.constant 0 : index
    %c0_51 = arith.constant 0 : index
    %132 = vector.load %arg9[%c0_49, %c0_50, %c0_51] : memref<1x1x64xf32, #tpu.memory_space<vmem>>, vector<1x1x64xf32>
    %133 = vector.shape_cast %132 : vector<1x1x64xf32> to vector<1x64xf32>
    %134 = vector.broadcast %133 : vector<1x64xf32> to vector<8x64xf32>
    %135 = arith.addf %131, %134 : vector<8x64xf32>
    %cst_52 = arith.constant 0.000000e+00 : f32
    %136 = vector.broadcast %cst_52 : f32 to vector<8x64xf32>
    %137 = arith.maximumf %135, %136 : vector<8x64xf32>
    %138 = arith.truncf %137 : vector<8x64xf32> to vector<8x64xbf16>
    %c0_53 = arith.constant 0 : index
    %c0_54 = arith.constant 0 : index
    %c0_55 = arith.constant 0 : index
    %139 = vector.load %arg10[%c0_53, %c0_54, %c0_55] : memref<1x64x32xbf16, #tpu.memory_space<vmem>>, vector<1x64x32xbf16>
    %140 = vector.shape_cast %139 : vector<1x64x32xbf16> to vector<64x32xbf16>
    %cst_56 = arith.constant dense<0.000000e+00> : vector<8x32xf32>
    %141 = tpu.matmul %138, %140, %cst_56 {dimension_numbers = #tpu.dot_dimension_numbers<[1], [0], [0], [1], [0, 0, 1, 1], [], []>} : vector<8x64xbf16>, vector<64x32xbf16>, vector<8x32xf32> -> vector<8x32xf32>
    %c0_57 = arith.constant 0 : index
    %c0_58 = arith.constant 0 : index
    %c0_59 = arith.constant 0 : index
    %142 = vector.load %arg11[%c0_57, %c0_58, %c0_59] : memref<1x1x32xf32, #tpu.memory_space<vmem>>, vector<1x1x32xf32>
    %143 = vector.shape_cast %142 : vector<1x1x32xf32> to vector<1x32xf32>
    %144 = vector.broadcast %143 : vector<1x32xf32> to vector<8x32xf32>
    %145 = arith.addf %141, %144 : vector<8x32xf32>
    %146 = arith.addf %127, %145 : vector<8x32xf32>
    %c0_60 = arith.constant 0 : index
    %c0_61 = arith.constant 0 : index
    %c0_62 = arith.constant 0 : index
    %147 = vector.load %arg12[%c0_60, %c0_61, %c0_62] : memref<1x1x32xf32, #tpu.memory_space<vmem>>, vector<1x1x32xf32>
    %148 = vector.shape_cast %147 : vector<1x1x32xf32> to vector<1x32xf32>
    %c0_63 = arith.constant 0 : index
    %c0_64 = arith.constant 0 : index
    %c0_65 = arith.constant 0 : index
    %149 = vector.load %arg13[%c0_63, %c0_64, %c0_65] : memref<1x1x32xf32, #tpu.memory_space<vmem>>, vector<1x1x32xf32>
    %150 = vector.shape_cast %149 : vector<1x1x32xf32> to vector<1x32xf32>
    %cst_66 = arith.constant dense<0.000000e+00> : vector<8xf32>
    %151 = vector.multi_reduction <add>, %146, %cst_66 [1] : vector<8x32xf32> to vector<8xf32>
    %152 = vector.shape_cast %151 : vector<8xf32> to vector<8x1xf32>
    %cst_67 = arith.constant 3.200000e+01 : f32
    %153 = vector.broadcast %cst_67 : f32 to vector<8x1xf32>
    %154 = arith.divf %152, %153 : vector<8x1xf32>
    %155 = vector.broadcast %154 : vector<8x1xf32> to vector<8x32xf32>
    %156 = arith.subf %146, %155 : vector<8x32xf32>
    %157 = arith.mulf %156, %156 : vector<8x32xf32>
    %cst_68 = arith.constant dense<0.000000e+00> : vector<8xf32>
    %158 = vector.multi_reduction <add>, %157, %cst_68 [1] : vector<8x32xf32> to vector<8xf32>
    %159 = vector.shape_cast %158 : vector<8xf32> to vector<8x1xf32>
    %cst_69 = arith.constant 3.200000e+01 : f32
    %160 = vector.broadcast %cst_69 : f32 to vector<8x1xf32>
    %161 = arith.divf %159, %160 : vector<8x1xf32>
    %cst_70 = arith.constant 9.99999974E-6 : f32
    %162 = vector.broadcast %cst_70 : f32 to vector<8x1xf32>
    %163 = arith.addf %161, %162 : vector<8x1xf32>
    %164 = math.rsqrt %163 : vector<8x1xf32>
    %165 = vector.broadcast %164 : vector<8x1xf32> to vector<8x32xf32>
    %166 = arith.mulf %156, %165 : vector<8x32xf32>
    %167 = vector.broadcast %148 : vector<1x32xf32> to vector<8x32xf32>
    %168 = arith.mulf %166, %167 : vector<8x32xf32>
    %169 = vector.broadcast %150 : vector<1x32xf32> to vector<8x32xf32>
    %170 = arith.addf %168, %169 : vector<8x32xf32>
    %c0_71 = arith.constant 0 : index
    %c0_72 = arith.constant 0 : index
    %171 = vector.load %arg14[%c0_71, %c0_72] : memref<8x32xf32, #tpu.memory_space<vmem>>, vector<8x32xf32>
    tpu.vector_store %arg14[%c0_71, %c0_72], %170 {strides = array<i32>} : memref<8x32xf32, #tpu.memory_space<vmem>>, vector<8x32xf32>,
    return
  }
  func.func @transform_0(%arg0: i32) -> (i32, i32) {
    %c0_i32 = arith.constant 0 : i32
    %c0_i32_0 = arith.constant 0 : i32
    %c0_i32_1 = arith.constant 0 : i32
    return %c0_i32, %c0_i32_0 : i32, i32
  }
  func.func @transform_1(%arg0: i32) -> (i32, i32, i32) {
    %c0_i32 = arith.constant 0 : i32
    %c0_i32_0 = arith.constant 0 : i32
    %c0_i32_1 = arith.constant 0 : i32
    return %arg0, %c0_i32, %c0_i32_0 : i32, i32, i32
  }
  func.func @transform_2(%arg0: i32) -> (i32, i32, i32) {
    %c0_i32 = arith.constant 0 : i32
    %c0_i32_0 = arith.constant 0 : i32
    %c0_i32_1 = arith.constant 0 : i32
    return %arg0, %c0_i32, %c0_i32_0 : i32, i32, i32
  }
  func.func @transform_3(%arg0: i32) -> (i32, i32, i32) {
    %c0_i32 = arith.constant 0 : i32
    %c0_i32_0 = arith.constant 0 : i32
    %c0_i32_1 = arith.constant 0 : i32
    return %arg0, %c0_i32, %c0_i32_0 : i32, i32, i32
  }
  func.func @transform_4(%arg0: i32) -> (i32, i32, i32) {
    %c0_i32 = arith.constant 0 : i32
    %c0_i32_0 = arith.constant 0 : i32
    %c0_i32_1 = arith.constant 0 : i32
    return %arg0, %c0_i32, %c0_i32_0 : i32, i32, i32
  }
  func.func @transform_5(%arg0: i32) -> (i32, i32, i32) {
    %c0_i32 = arith.constant 0 : i32
    %c0_i32_0 = arith.constant 0 : i32
    %c0_i32_1 = arith.constant 0 : i32
    return %arg0, %c0_i32, %c0_i32_0 : i32, i32, i32
  }
  func.func @transform_6(%arg0: i32) -> (i32, i32, i32) {
    %c0_i32 = arith.constant 0 : i32
    %c0_i32_0 = arith.constant 0 : i32
    %c0_i32_1 = arith.constant 0 : i32
    return %arg0, %c0_i32, %c0_i32_0 : i32, i32, i32
  }
  func.func @transform_7(%arg0: i32) -> (i32, i32, i32) {
    %c0_i32 = arith.constant 0 : i32
    %c0_i32_0 = arith.constant 0 : i32
    %c0_i32_1 = arith.constant 0 : i32
    return %arg0, %c0_i32, %c0_i32_0 : i32, i32, i32
  }
  func.func @transform_8(%arg0: i32) -> (i32, i32, i32) {
    %c0_i32 = arith.constant 0 : i32
    %c0_i32_0 = arith.constant 0 : i32
    %c0_i32_1 = arith.constant 0 : i32
    return %arg0, %c0_i32, %c0_i32_0 : i32, i32, i32
  }
  func.func @transform_9(%arg0: i32) -> (i32, i32, i32) {
    %c0_i32 = arith.constant 0 : i32
    %c0_i32_0 = arith.constant 0 : i32
    %c0_i32_1 = arith.constant 0 : i32
    return %arg0, %c0_i32, %c0_i32_0 : i32, i32, i32
  }
  func.func @transform_10(%arg0: i32) -> (i32, i32, i32) {
    %c0_i32 = arith.constant 0 : i32
    %c0_i32_0 = arith.constant 0 : i32
    %c0_i32_1 = arith.constant 0 : i32
    return %arg0, %c0_i32, %c0_i32_0 : i32, i32, i32
  }
  func.func @transform_11(%arg0: i32) -> (i32, i32, i32) {
    %c0_i32 = arith.constant 0 : i32
    %c0_i32_0 = arith.constant 0 : i32
    %c0_i32_1 = arith.constant 0 : i32
    return %arg0, %c0_i32, %c0_i32_0 : i32, i32, i32
  }
  func.func @transform_12(%arg0: i32) -> (i32, i32, i32) {
    %c0_i32 = arith.constant 0 : i32
    %c0_i32_0 = arith.constant 0 : i32
    %c0_i32_1 = arith.constant 0 : i32
    return %arg0, %c0_i32, %c0_i32_0 : i32, i32, i32
  }
  func.func @transform_13(%arg0: i32) -> (i32, i32) {
    %c0_i32 = arith.constant 0 : i32
    %c0_i32_0 = arith.constant 0 : i32
    %c0_i32_1 = arith.constant 0 : i32
    return %c0_i32, %c0_i32_0 : i32, i32
  }
}

</mosaic_0001>

<llo_original>
// kernel: tpu_custom_call.1
$region0: #{tpu_custom_call.1}
  #allocation0 [shape = 'u32[]', space=smem, size = 0x4, offset = 0x4, fixed_abs, tag = 'smem constant byte address 0x4 - core index']
  #allocation1 [shape = 'u32[72,128]{1,0:T(1,128)}', space=vmem, size = 0x9000, scoped, tag = 'internal scratch']
  %s0 = inlined_call_operand.hbm [shape: f32[8,32], index: 0, kind: input, shape index: {}, may-alias: {0,13}]
  %s1 = inlined_call_operand.vmem [shape: bf16[2,32,96], index: 1, kind: input, shape index: {}]
  %s2 = inlined_call_operand.vmem [shape: f32[2,1,96], index: 2, kind: input, shape index: {}]
  %s3 = inlined_call_operand.vmem [shape: bf16[2,32,32], index: 3, kind: input, shape index: {}]
  %s4 = inlined_call_operand.vmem [shape: f32[2,1,32], index: 4, kind: input, shape index: {}]
  %s5 = inlined_call_operand.vmem [shape: f32[2,1,32], index: 5, kind: input, shape index: {}]
  %s6 = inlined_call_operand.vmem [shape: f32[2,1,32], index: 6, kind: input, shape index: {}]
  %s7 = inlined_call_operand.vmem [shape: bf16[2,32,64], index: 7, kind: input, shape index: {}]
  %s8 = inlined_call_operand.vmem [shape: f32[2,1,64], index: 8, kind: input, shape index: {}]
  %s9 = inlined_call_operand.vmem [shape: bf16[2,64,32], index: 9, kind: input, shape index: {}]
  %s10 = inlined_call_operand.vmem [shape: f32[2,1,32], index: 10, kind: input, shape index: {}]
  %s11 = inlined_call_operand.vmem [shape: f32[2,1,32], index: 11, kind: input, shape index: {}]
  %s12 = inlined_call_operand.vmem [shape: f32[2,1,32], index: 12, kind: input, shape index: {}]
  %s13 = inlined_call_operand.hbm [shape: f32[8,32], index: 13, kind: output, shape index: {}, may-alias: {0,13}]
  %s14 = sld [smem:[#allocation0]]
  $region93: #{tpu_custom_call.1} parent=0
    _
  %s16 = ssub.s32 1, %s14
  %s17 = scalar_select 0, %s16, %s14
  $region1: #{tpu_custom_call.1} parent=0
    #allocation2 [shape = 'u8[4096]{0}', space=vmem, size = 0x1000, scoped, tag = 'input window, operand 0, single buffered']
    #allocation3 [shape = 's32[2]{0}', space=sflag, size = 0x8, scoped, tag = 'scoped memory for tpu_custom_call.1']
    #allocation4 [shape = 's32[2]{0}', space=sflag, size = 0x8, scoped, tag = 'scoped memory for tpu_custom_call.1']
    #allocation5 [shape = 'u8[4096]{0}', space=vmem, size = 0x1000, scoped, tag = 'output window, operand 0, single buffered']
    %18 = vsyncpa [#allocation3], 0
    %19 = vsyncpa [#allocation4], 0
    loop: start=0, step=1, limit=4
    $region2: #{tpu_custom_call.1} parent=1 // loop_pre_header
      _
    $region3: #{tpu_custom_call.1} parent=1 // loop_header
      %s21 = sphi 0, %s25
      %p22 = scmp.ge.s32.totalorder %s21, 4
      %s29 = sphi 0, %s29
      %s31 = sphi 0, %s29
      %s32 = sphi 0, %s31
      %s46 = sphi 0, %s32
      %s52 = sphi 0, %s54
      %s55 = sphi 0, %s52
      %s56 = sphi 0, %s55
      %s72 = sphi 0, %s56
      %s78 = sphi 0, %s80
      %s81 = sphi 0, %s78
      %s82 = sphi 0, %s81
      %s98 = sphi 0, %s82
      %s104 = sphi 0, %s106
      %s107 = sphi 0, %s104
      %s108 = sphi 0, %s107
      %s124 = sphi 0, %s108
      %s130 = sphi 0, %s132
      %s133 = sphi 0, %s130
      %s134 = sphi 0, %s133
      %s150 = sphi 0, %s134
      %s156 = sphi 0, %s158
      %s159 = sphi 0, %s156
      %s160 = sphi 0, %s159
      %s176 = sphi 0, %s160
      %s182 = sphi 0, %s184
      %s185 = sphi 0, %s182
      %s186 = sphi 0, %s185
      %s202 = sphi 0, %s186
      %s208 = sphi 0, %s210
      %s211 = sphi 0, %s208
      %s212 = sphi 0, %s211
      %s228 = sphi 0, %s212
      %s234 = sphi 0, %s236
      %s237 = sphi 0, %s234
      %s238 = sphi 0, %s237
      %s254 = sphi 0, %s238
      %s260 = sphi 0, %s262
      %s263 = sphi 0, %s260
      %s264 = sphi 0, %s263
      %s280 = sphi 0, %s264
      %s286 = sphi 0, %s288
      %s289 = sphi 0, %s286
      %s290 = sphi 0, %s289
      %s306 = sphi 0, %s290
      %s312 = sphi 0, %s314
      %s315 = sphi 0, %s312
      %s316 = sphi 0, %s315
      %s332 = sphi 0, %s316
      %s338 = sphi 0, %s340
      %s341 = sphi 0, %s338
      %s342 = sphi 0, %s341
      %s358 = sphi 0, %s342
      %s362 = sphi 0, %s362
      %s364 = sphi 0, %s362
      %s365 = sphi 0, %s364
      %s379 = sphi 0, %s365
    $region4: #{tpu_custom_call.1} parent=1 // loop_header_branch
      %24 = sbr.rel (%p22) target = $region8
    $region5: #{tpu_custom_call.1} parent=1 // loop_body
      %s26 = ssub.s32 %s21, 1
      %s27 = ssub.s32 %s21, 2
      %s28 = sadd.s32 %s21, 1
      %s30 = sadd.s32 %s29, 1
      %p33 = scmp.eq.s32.totalorder %s21, 1
      %p34 = scmp.ne.s32.totalorder %s29, %s31
      %p35 = scmp.eq.s32.totalorder %s21, 0
      %p36 = por %p34, %p35
      %p37 = scmp.ne.s32.totalorder %s29, %s31
      %p38 = scmp.eq.s32.totalorder %s26, 1
      %p39 = por %p37, %p38
      %p40 = scmp.ne.s32.totalorder %s31, %s32
      %p41 = scmp.eq.s32.totalorder %s26, 0
      %p42 = por %p40, %p41
      %p43 = scmp.ne.s32.totalorder %s31, %s32
      %p44 = scmp.eq.s32.totalorder %s27, 1
      %p45 = por %p43, %p44
      %p47 = scmp.ne.s32.totalorder %s32, %s46
      %p48 = scmp.eq.s32.totalorder %s27, 0
      %p49 = por %p47, %p48
      %s50 = ssub.s32 %s21, %s28
      %p51 = scmp.eq.s32.totalorder %s50, 0
      %s53 = sadd.s32 %s52, 1
      %s54 = scalar_select %p51, %s52, %s53
      %p57 = pneg %p51
      %p58 = scmp.eq.s32.totalorder %s21, 1
      %p59 = por %p57, %p58
      %p60 = scmp.ne.s32.totalorder %s52, %s55
      %p61 = scmp.eq.s32.totalorder %s21, 0
      %p62 = por %p60, %p61
      %p63 = scmp.ne.s32.totalorder %s52, %s55
      %p64 = scmp.eq.s32.totalorder %s26, 1
      %p65 = por %p63, %p64
      %p66 = scmp.ne.s32.totalorder %s55, %s56
      %p67 = scmp.eq.s32.totalorder %s26, 0
      %p68 = por %p66, %p67
      %p69 = scmp.ne.s32.totalorder %s55, %s56
      %p70 = scmp.eq.s32.totalorder %s27, 1
      %p71 = por %p69, %p70
      %p73 = scmp.ne.s32.totalorder %s56, %s72
      %p74 = scmp.eq.s32.totalorder %s27, 0
      %p75 = por %p73, %p74
      %s76 = ssub.s32 %s21, %s28
      %p77 = scmp.eq.s32.totalorder %s76, 0
      %s79 = sadd.s32 %s78, 1
      %s80 = scalar_select %p77, %s78, %s79
      %p83 = pneg %p77
      %p84 = scmp.eq.s32.totalorder %s21, 1
      %p85 = por %p83, %p84
      %p86 = scmp.ne.s32.totalorder %s78, %s81
      %p87 = scmp.eq.s32.totalorder %s21, 0
      %p88 = por %p86, %p87
      %p89 = scmp.ne.s32.totalorder %s78, %s81
      %p90 = scmp.eq.s32.totalorder %s26, 1
      %p91 = por %p89, %p90
      %p92 = scmp.ne.s32.totalorder %s81, %s82
      %p93 = scmp.eq.s32.totalorder %s26, 0
      %p94 = por %p92, %p93
      %p95 = scmp.ne.s32.totalorder %s81, %s82
      %p96 = scmp.eq.s32.totalorder %s27, 1
      %p97 = por %p95, %p96
      %p99 = scmp.ne.s32.totalorder %s82, %s98
      %p100 = scmp.eq.s32.totalorder %s27, 0
      %p101 = por %p99, %p100
      %s102 = ssub.s32 %s21, %s28
      %p103 = scmp.eq.s32.totalorder %s102, 0
      %s105 = sadd.s32 %s104, 1
      %s106 = scalar_select %p103, %s104, %s105
      %p109 = pneg %p103
      %p110 = scmp.eq.s32.totalorder %s21, 1
      %p111 = por %p109, %p110
      %p112 = scmp.ne.s32.totalorder %s104, %s107
      %p113 = scmp.eq.s32.totalorder %s21, 0
      %p114 = por %p112, %p113
      %p115 = scmp.ne.s32.totalorder %s104, %s107
      %p116 = scmp.eq.s32.totalorder %s26, 1
      %p117 = por %p115, %p116
      %p118 = scmp.ne.s32.totalorder %s107, %s108
      %p119 = scmp.eq.s32.totalorder %s26, 0
      %p120 = por %p118, %p119
      %p121 = scmp.ne.s32.totalorder %s107, %s108
      %p122 = scmp.eq.s32.totalorder %s27, 1
      %p123 = por %p121, %p122
      %p125 = scmp.ne.s32.totalorder %s108, %s124
      %p126 = scmp.eq.s32.totalorder %s27, 0
      %p127 = por %p125, %p126
      %s128 = ssub.s32 %s21, %s28
      %p129 = scmp.eq.s32.totalorder %s128, 0
      %s131 = sadd.s32 %s130, 1
      %s132 = scalar_select %p129, %s130, %s131
      %p135 = pneg %p129
      %p136 = scmp.eq.s32.totalorder %s21, 1
      %p137 = por %p135, %p136
      %p138 = scmp.ne.s32.totalorder %s130, %s133
      %p139 = scmp.eq.s32.totalorder %s21, 0
      %p140 = por %p138, %p139
      %p141 = scmp.ne.s32.totalorder %s130, %s133
      %p142 = scmp.eq.s32.totalorder %s26, 1
      %p143 = por %p141, %p142
      %p144 = scmp.ne.s32.totalorder %s133, %s134
      %p145 = scmp.eq.s32.totalorder %s26, 0
      %p146 = por %p144, %p145
      %p147 = scmp.ne.s32.totalorder %s133, %s134
      %p148 = scmp.eq.s32.totalorder %s27, 1
      %p149 = por %p147, %p148
      %p151 = scmp.ne.s32.totalorder %s134, %s150
      %p152 = scmp.eq.s32.totalorder %s27, 0
      %p153 = por %p151, %p152
      %s154 = ssub.s32 %s21, %s28
      %p155 = scmp.eq.s32.totalorder %s154, 0
      %s157 = sadd.s32 %s156, 1
      %s158 = scalar_select %p155, %s156, %s157
      %p161 = pneg %p155
      %p162 = scmp.eq.s32.totalorder %s21, 1
      %p163 = por %p161, %p162
      %p164 = scmp.ne.s32.totalorder %s156, %s159
      %p165 = scmp.eq.s32.totalorder %s21, 0
      %p166 = por %p164, %p165
      %p167 = scmp.ne.s32.totalorder %s156, %s159
      %p168 = scmp.eq.s32.totalorder %s26, 1
      %p169 = por %p167, %p168
      %p170 = scmp.ne.s32.totalorder %s159, %s160
      %p171 = scmp.eq.s32.totalorder %s26, 0
      %p172 = por %p170, %p171
      %p173 = scmp.ne.s32.totalorder %s159, %s160
      %p174 = scmp.eq.s32.totalorder %s27, 1
      %p175 = por %p173, %p174
      %p177 = scmp.ne.s32.totalorder %s160, %s176
      %p178 = scmp.eq.s32.totalorder %s27, 0
      %p179 = por %p177, %p178
      %s180 = ssub.s32 %s21, %s28
      %p181 = scmp.eq.s32.totalorder %s180, 0
      %s183 = sadd.s32 %s182, 1
      %s184 = scalar_select %p181, %s182, %s183
      %p187 = pneg %p181
      %p188 = scmp.eq.s32.totalorder %s21, 1
      %p189 = por %p187, %p188
      %p190 = scmp.ne.s32.totalorder %s182, %s185
      %p191 = scmp.eq.s32.totalorder %s21, 0
      %p192 = por %p190, %p191
      %p193 = scmp.ne.s32.totalorder %s182, %s185
      %p194 = scmp.eq.s32.totalorder %s26, 1
      %p195 = por %p193, %p194
      %p196 = scmp.ne.s32.totalorder %s185, %s186
      %p197 = scmp.eq.s32.totalorder %s26, 0
      %p198 = por %p196, %p197
      %p199 = scmp.ne.s32.totalorder %s185, %s186
      %p200 = scmp.eq.s32.totalorder %s27, 1
      %p201 = por %p199, %p200
      %p203 = scmp.ne.s32.totalorder %s186, %s202
      %p204 = scmp.eq.s32.totalorder %s27, 0
      %p205 = por %p203, %p204
      %s206 = ssub.s32 %s21, %s28
      %p207 = scmp.eq.s32.totalorder %s206, 0
      %s209 = sadd.s32 %s208, 1
      %s210 = scalar_select %p207, %s208, %s209
      %p213 = pneg %p207
      %p214 = scmp.eq.s32.totalorder %s21, 1
      %p215 = por %p213, %p214
      %p216 = scmp.ne.s32.totalorder %s208, %s211
      %p217 = scmp.eq.s32.totalorder %s21, 0
      %p218 = por %p216, %p217
      %p219 = scmp.ne.s32.totalorder %s208, %s211
      %p220 = scmp.eq.s32.totalorder %s26, 1
      %p221 = por %p219, %p220
      %p222 = scmp.ne.s32.totalorder %s211, %s212
      %p223 = scmp.eq.s32.totalorder %s26, 0
      %p224 = por %p222, %p223
      %p225 = scmp.ne.s32.totalorder %s211, %s212
      %p226 = scmp.eq.s32.totalorder %s27, 1
      %p227 = por %p225, %p226
      %p229 = scmp.ne.s32.totalorder %s212, %s228
      %p230 = scmp.eq.s32.totalorder %s27, 0
      %p231 = por %p229, %p230
      %s232 = ssub.s32 %s21, %s28
      %p233 = scmp.eq.s32.totalorder %s232, 0
      %s235 = sadd.s32 %s234, 1
      %s236 = scalar_select %p233, %s234, %s235
      %p239 = pneg %p233
      %p240 = scmp.eq.s32.totalorder %s21, 1
      %p241 = por %p239, %p240
      %p242 = scmp.ne.s32.totalorder %s234, %s237
      %p243 = scmp.eq.s32.totalorder %s21, 0
      %p244 = por %p242, %p243
      %p245 = scmp.ne.s32.totalorder %s234, %s237
      %p246 = scmp.eq.s32.totalorder %s26, 1
      %p247 = por %p245, %p246
      %p248 = scmp.ne.s32.totalorder %s237, %s238
      %p249 = scmp.eq.s32.totalorder %s26, 0
      %p250 = por %p248, %p249
      %p251 = scmp.ne.s32.totalorder %s237, %s238
      %p252 = scmp.eq.s32.totalorder %s27, 1
      %p253 = por %p251, %p252
      %p255 = scmp.ne.s32.totalorder %s238, %s254
      %p256 = scmp.eq.s32.totalorder %s27, 0
      %p257 = por %p255, %p256
      %s258 = ssub.s32 %s21, %s28
      %p259 = scmp.eq.s32.totalorder %s258, 0
      %s261 = sadd.s32 %s260, 1
      %s262 = scalar_select %p259, %s260, %s261
      %p265 = pneg %p259
      %p266 = scmp.eq.s32.totalorder %s21, 1
      %p267 = por %p265, %p266
      %p268 = scmp.ne.s32.totalorder %s260, %s263
      %p269 = scmp.eq.s32.totalorder %s21, 0
      %p270 = por %p268, %p269
      %p271 = scmp.ne.s32.totalorder %s260, %s263
      %p272 = scmp.eq.s32.totalorder %s26, 1
      %p273 = por %p271, %p272
      %p274 = scmp.ne.s32.totalorder %s263, %s264
      %p275 = scmp.eq.s32.totalorder %s26, 0
      %p276 = por %p274, %p275
      %p277 = scmp.ne.s32.totalorder %s263, %s264
      %p278 = scmp.eq.s32.totalorder %s27, 1
      %p279 = por %p277, %p278
      %p281 = scmp.ne.s32.totalorder %s264, %s280
      %p282 = scmp.eq.s32.totalorder %s27, 0
      %p283 = por %p281, %p282
      %s284 = ssub.s32 %s21, %s28
      %p285 = scmp.eq.s32.totalorder %s284, 0
      %s287 = sadd.s32 %s286, 1
      %s288 = scalar_select %p285, %s286, %s287
      %p291 = pneg %p285
      %p292 = scmp.eq.s32.totalorder %s21, 1
      %p293 = por %p291, %p292
      %p294 = scmp.ne.s32.totalorder %s286, %s289
      %p295 = scmp.eq.s32.totalorder %s21, 0
      %p296 = por %p294, %p295
      %p297 = scmp.ne.s32.totalorder %s286, %s289
      %p298 = scmp.eq.s32.totalorder %s26, 1
      %p299 = por %p297, %p298
      %p300 = scmp.ne.s32.totalorder %s289, %s290
      %p301 = scmp.eq.s32.totalorder %s26, 0
      %p302 = por %p300, %p301
      %p303 = scmp.ne.s32.totalorder %s289, %s290
      %p304 = scmp.eq.s32.totalorder %s27, 1
      %p305 = por %p303, %p304
      %p307 = scmp.ne.s32.totalorder %s290, %s306
      %p308 = scmp.eq.s32.totalorder %s27, 0
      %p309 = por %p307, %p308
      %s310 = ssub.s32 %s21, %s28
      %p311 = scmp.eq.s32.totalorder %s310, 0
      %s313 = sadd.s32 %s312, 1
      %s314 = scalar_select %p311, %s312, %s313
      %p317 = pneg %p311
      %p318 = scmp.eq.s32.totalorder %s21, 1
      %p319 = por %p317, %p318
      %p320 = scmp.ne.s32.totalorder %s312, %s315
      %p321 = scmp.eq.s32.totalorder %s21, 0
      %p322 = por %p320, %p321
      %p323 = scmp.ne.s32.totalorder %s312, %s315
      %p324 = scmp.eq.s32.totalorder %s26, 1
      %p325 = por %p323, %p324
      %p326 = scmp.ne.s32.totalorder %s315, %s316
      %p327 = scmp.eq.s32.totalorder %s26, 0
      %p328 = por %p326, %p327
      %p329 = scmp.ne.s32.totalorder %s315, %s316
      %p330 = scmp.eq.s32.totalorder %s27, 1
      %p331 = por %p329, %p330
      %p333 = scmp.ne.s32.totalorder %s316, %s332
      %p334 = scmp.eq.s32.totalorder %s27, 0
      %p335 = por %p333, %p334
      %s336 = ssub.s32 %s21, %s28
      %p337 = scmp.eq.s32.totalorder %s336, 0
      %s339 = sadd.s32 %s338, 1
      %s340 = scalar_select %p337, %s338, %s339
      %p343 = pneg %p337
      %p344 = scmp.eq.s32.totalorder %s21, 1
      %p345 = por %p343, %p344
      %p346 = scmp.ne.s32.totalorder %s338, %s341
      %p347 = scmp.eq.s32.totalorder %s21, 0
      %p348 = por %p346, %p347
      %p349 = scmp.ne.s32.totalorder %s338, %s341
      %p350 = scmp.eq.s32.totalorder %s26, 1
      %p351 = por %p349, %p350
      %p352 = scmp.ne.s32.totalorder %s341, %s342
      %p353 = scmp.eq.s32.totalorder %s26, 0
      %p354 = por %p352, %p353
      %p355 = scmp.ne.s32.totalorder %s341, %s342
      %p356 = scmp.eq.s32.totalorder %s27, 1
      %p357 = por %p355, %p356
      %p359 = scmp.ne.s32.totalorder %s342, %s358
      %p360 = scmp.eq.s32.totalorder %s27, 0
      %p361 = por %p359, %p360
      %s363 = sadd.s32 %s362, 1
      %p366 = scmp.eq.s32.totalorder %s21, 1
      %p367 = scmp.ne.s32.totalorder %s362, %s364
      %p368 = scmp.eq.s32.totalorder %s21, 0
      %p369 = por %p367, %p368
      %p370 = scmp.ne.s32.totalorder %s362, %s364
      %p371 = scmp.eq.s32.totalorder %s26, 1
      %p372 = por %p370, %p371
      %p373 = scmp.ne.s32.totalorder %s364, %s365
      %p374 = scmp.eq.s32.totalorder %s26, 0
      %p375 = por %p373, %p374
      %p376 = scmp.ne.s32.totalorder %s364, %s365
      %p377 = scmp.eq.s32.totalorder %s27, 1
      %p378 = por %p376, %p377
      %p380 = scmp.ne.s32.totalorder %s365, %s379
      %p381 = scmp.eq.s32.totalorder %s27, 0
      %p382 = por %p380, %p381
      %p383 = scmp.le.s32.totalorder 1, %s21
      %p384 = scmp.lt.s32.totalorder %s21, 3
      %p385 = pnand %p383, %p384
      %p386 = pneg %p385
      // Predicated region
      $region9: #{tpu_custom_call.1} parent=5 // pred_check
        _
      $region10: #{tpu_custom_call.1} parent=5 // pred_check_branch
        %388 = sbr.rel (%p385) target = $region12
      $region11: #{tpu_custom_call.1} parent=5 // pred_region
        %s389 = ssub.s32 %s21, 1
        // Predicated region
        $region13: #{tpu_custom_call.1} parent=11 // pred_check
          %p390 = pneg %p42
        $region14: #{tpu_custom_call.1} parent=11 // pred_check_branch
          %392 = sbr.rel (%p390) target = $region16
        $region15: #{tpu_custom_call.1} parent=11 // pred_region
          %394 = vsyncadd [#allocation3], 0
          %s396 = sshll.u32 %s0, 4
          %s397 = int_to_ptr.hbm [resolvable:$true] %s396
          %s398 = sshll.u32 [#allocation2], 4
          %s399 = int_to_ptr.vmem [resolvable:$true] %s398
          %401 = dma.hbm_to_vmem [thread:$0]  %s397, 128, %s399, [#allocation3]
        $region16: #{tpu_custom_call.1} parent=11 // pred_fallthru
          _
      $region12: #{tpu_custom_call.1} parent=5 // pred_fallthru
        _
      %p402 = scmp.lt.s32.totalorder %s21, 2
      // Predicated region
      $region17: #{tpu_custom_call.1} parent=5 // pred_check
        %p403 = pneg %p402
      $region18: #{tpu_custom_call.1} parent=5 // pred_check_branch
        %405 = sbr.rel (%p403) target = $region20
      $region19: #{tpu_custom_call.1} parent=5 // pred_region
        // Predicated region
        $region21: #{tpu_custom_call.1} parent=19 // pred_check
          %p406 = pneg %p62
        $region22: #{tpu_custom_call.1} parent=19 // pred_check_branch
          %408 = sbr.rel (%p406) target = $region24
        $region23: #{tpu_custom_call.1} parent=19 // pred_region
          %p409 = scmp.lt.s32.totalorder %s21, 1
          %s410 = scalar_select %p409, %s21, 1
          %s411 = smul.addr %s410, 4
          %s412 = smul.addr %s411, 4
          %s413 = scalar_lea.vmem %s1, %s412
        $region24: #{tpu_custom_call.1} parent=19 // pred_fallthru
          _
        // Predicated region
        $region25: #{tpu_custom_call.1} parent=19 // pred_check
          %p414 = pneg %p88
        $region26: #{tpu_custom_call.1} parent=19 // pred_check_branch
          %416 = sbr.rel (%p414) target = $region28
        $region27: #{tpu_custom_call.1} parent=19 // pred_region
          %p417 = scmp.lt.s32.totalorder %s21, 1
          %s418 = scalar_select %p417, %s21, 1
          %s419 = scalar_lea.vmem %s2, %s418
        $region28: #{tpu_custom_call.1} parent=19 // pred_fallthru
          _
        // Predicated region
        $region29: #{tpu_custom_call.1} parent=19 // pred_check
          %p420 = pneg %p114
        $region30: #{tpu_custom_call.1} parent=19 // pred_check_branch
          %422 = sbr.rel (%p420) target = $region32
        $region31: #{tpu_custom_call.1} parent=19 // pred_region
          %p423 = scmp.lt.s32.totalorder %s21, 1
          %s424 = scalar_select %p423, %s21, 1
          %s425 = smul.addr %s424, 4
          %s426 = smul.addr %s425, 4
          %s427 = scalar_lea.vmem %s3, %s426
        $region32: #{tpu_custom_call.1} parent=19 // pred_fallthru
          _
        // Predicated region
        $region33: #{tpu_custom_call.1} parent=19 // pred_check
          %p428 = pneg %p140
        $region34: #{tpu_custom_call.1} parent=19 // pred_check_branch
          %430 = sbr.rel (%p428) target = $region36
        $region35: #{tpu_custom_call.1} parent=19 // pred_region
          %p431 = scmp.lt.s32.totalorder %s21, 1
          %s432 = scalar_select %p431, %s21, 1
          %s433 = scalar_lea.vmem %s4, %s432
        $region36: #{tpu_custom_call.1} parent=19 // pred_fallthru
          _
        // Predicated region
        $region37: #{tpu_custom_call.1} parent=19 // pred_check
          %p434 = pneg %p166
        $region38: #{tpu_custom_call.1} parent=19 // pred_check_branch
          %436 = sbr.rel (%p434) target = $region40
        $region39: #{tpu_custom_call.1} parent=19 // pred_region
          %p437 = scmp.lt.s32.totalorder %s21, 1
          %s438 = scalar_select %p437, %s21, 1
          %s439 = scalar_lea.vmem %s5, %s438
        $region40: #{tpu_custom_call.1} parent=19 // pred_fallthru
          _
        // Predicated region
        $region41: #{tpu_custom_call.1} parent=19 // pred_check
          %p440 = pneg %p192
        $region42: #{tpu_custom_call.1} parent=19 // pred_check_branch
          %442 = sbr.rel (%p440) target = $region44
        $region43: #{tpu_custom_call.1} parent=19 // pred_region
          %p443 = scmp.lt.s32.totalorder %s21, 1
          %s444 = scalar_select %p443, %s21, 1
          %s445 = scalar_lea.vmem %s6, %s444
        $region44: #{tpu_custom_call.1} parent=19 // pred_fallthru
          _
        // Predicated region
        $region45: #{tpu_custom_call.1} parent=19 // pred_check
          %p446 = pneg %p218
        $region46: #{tpu_custom_call.1} parent=19 // pred_check_branch
          %448 = sbr.rel (%p446) target = $region48
        $region47: #{tpu_custom_call.1} parent=19 // pred_region
          %p449 = scmp.lt.s32.totalorder %s21, 1
          %s450 = scalar_select %p449, %s21, 1
          %s451 = smul.addr %s450, 4
          %s452 = smul.addr %s451, 4
          %s453 = scalar_lea.vmem %s7, %s452
        $region48: #{tpu_custom_call.1} parent=19 // pred_fallthru
          _
        // Predicated region
        $region49: #{tpu_custom_call.1} parent=19 // pred_check
          %p454 = pneg %p244
        $region50: #{tpu_custom_call.1} parent=19 // pred_check_branch
          %456 = sbr.rel (%p454) target = $region52
        $region51: #{tpu_custom_call.1} parent=19 // pred_region
          %p457 = scmp.lt.s32.totalorder %s21, 1
          %s458 = scalar_select %p457, %s21, 1
          %s459 = scalar_lea.vmem %s8, %s458
        $region52: #{tpu_custom_call.1} parent=19 // pred_fallthru
          _
        // Predicated region
        $region53: #{tpu_custom_call.1} parent=19 // pred_check
          %p460 = pneg %p270
        $region54: #{tpu_custom_call.1} parent=19 // pred_check_branch
          %462 = sbr.rel (%p460) target = $region56
        $region55: #{tpu_custom_call.1} parent=19 // pred_region
          %p463 = scmp.lt.s32.totalorder %s21, 1
          %s464 = scalar_select %p463, %s21, 1
          %s465 = smul.addr %s464, 8
          %s466 = smul.addr %s465, 4
          %s467 = scalar_lea.vmem %s9, %s466
        $region56: #{tpu_custom_call.1} parent=19 // pred_fallthru
          _
        // Predicated region
        $region57: #{tpu_custom_call.1} parent=19 // pred_check
          %p468 = pneg %p296
        $region58: #{tpu_custom_call.1} parent=19 // pred_check_branch
          %470 = sbr.rel (%p468) target = $region60
        $region59: #{tpu_custom_call.1} parent=19 // pred_region
          %p471 = scmp.lt.s32.totalorder %s21, 1
          %s472 = scalar_select %p471, %s21, 1
          %s473 = scalar_lea.vmem %s10, %s472
        $region60: #{tpu_custom_call.1} parent=19 // pred_fallthru
          _
        // Predicated region
        $region61: #{tpu_custom_call.1} parent=19 // pred_check
          %p474 = pneg %p322
        $region62: #{tpu_custom_call.1} parent=19 // pred_check_branch
          %476 = sbr.rel (%p474) target = $region64
        $region63: #{tpu_custom_call.1} parent=19 // pred_region
          %p477 = scmp.lt.s32.totalorder %s21, 1
          %s478 = scalar_select %p477, %s21, 1
          %s479 = scalar_lea.vmem %s11, %s478
        $region64: #{tpu_custom_call.1} parent=19 // pred_fallthru
          _
        // Predicated region
        $region65: #{tpu_custom_call.1} parent=19 // pred_check
          %p480 = pneg %p348
        $region66: #{tpu_custom_call.1} parent=19 // pred_check_branch
          %482 = sbr.rel (%p480) target = $region68
        $region67: #{tpu_custom_call.1} parent=19 // pred_region
          %p483 = scmp.lt.s32.totalorder %s21, 1
          %s484 = scalar_select %p483, %s21, 1
          %s485 = scalar_lea.vmem %s12, %s484
        $region68: #{tpu_custom_call.1} parent=19 // pred_fallthru
          _
      $region20: #{tpu_custom_call.1} parent=5 // pred_fallthru
        _
      %p486 = scmp.le.s32.totalorder 1, %s21
      %p487 = scmp.lt.s32.totalorder %s21, 3
      %p488 = pnand %p486, %p487
      %p489 = pneg %p488
      // Predicated region
      $region69: #{tpu_custom_call.1} parent=5 // pred_check
        _
      $region70: #{tpu_custom_call.1} parent=5 // pred_check_branch
        %491 = sbr.rel (%p488) target = $region72
      $region71: #{tpu_custom_call.1} parent=5 // pred_region
        %s492 = ssub.s32 %s21, 1
        // Predicated region
        $region73: #{tpu_custom_call.1} parent=71 // pred_check
          %p493 = pneg %p42
        $region74: #{tpu_custom_call.1} parent=71 // pred_check_branch
          %495 = sbr.rel (%p493) target = $region76
        $region75: #{tpu_custom_call.1} parent=71 // pred_region
          %497 = dma.done [#allocation3], 128
        $region76: #{tpu_custom_call.1} parent=71 // pred_fallthru
          _
        %p498 = pneg %p42
        %p499 = pneg %p39
        %p500 = scmp.lt.s32.totalorder %s26, 1
        %s501 = scalar_select %p500, %s26, 1
        %s502 = smul.addr %s501, 4
        %s503 = smul.addr %s502, 4
        %s504 = scalar_lea.vmem %s1, %s503
        %p505 = pneg %p68
        %p506 = pneg %p65
        %p507 = scmp.lt.s32.totalorder %s26, 1
        %s508 = scalar_select %p507, %s26, 1
        %s509 = scalar_lea.vmem %s2, %s508
        %p510 = pneg %p94
        %p511 = pneg %p91
        %p512 = scmp.lt.s32.totalorder %s26, 1
        %s513 = scalar_select %p512, %s26, 1
        %s514 = smul.addr %s513, 4
        %s515 = smul.addr %s514, 4
        %s516 = scalar_lea.vmem %s3, %s515
        %p517 = pneg %p120
        %p518 = pneg %p117
        %p519 = scmp.lt.s32.totalorder %s26, 1
        %s520 = scalar_select %p519, %s26, 1
        %s521 = scalar_lea.vmem %s4, %s520
        %p522 = pneg %p146
        %p523 = pneg %p143
        %p524 = scmp.lt.s32.totalorder %s26, 1
        %s525 = scalar_select %p524, %s26, 1
        %s526 = scalar_lea.vmem %s5, %s525
        %p527 = pneg %p172
        %p528 = pneg %p169
        %p529 = scmp.lt.s32.totalorder %s26, 1
        %s530 = scalar_select %p529, %s26, 1
        %s531 = scalar_lea.vmem %s6, %s530
        %p532 = pneg %p198
        %p533 = pneg %p195
        %p534 = scmp.lt.s32.totalorder %s26, 1
        %s535 = scalar_select %p534, %s26, 1
        %s536 = smul.addr %s535, 4
        %s537 = smul.addr %s536, 4
        %s538 = scalar_lea.vmem %s7, %s537
        %p539 = pneg %p224
        %p540 = pneg %p221
        %p541 = scmp.lt.s32.totalorder %s26, 1
        %s542 = scalar_select %p541, %s26, 1
        %s543 = scalar_lea.vmem %s8, %s542
        %p544 = pneg %p250
        %p545 = pneg %p247
        %p546 = scmp.lt.s32.totalorder %s26, 1
        %s547 = scalar_select %p546, %s26, 1
        %s548 = smul.addr %s547, 8
        %s549 = smul.addr %s548, 4
        %s550 = scalar_lea.vmem %s9, %s549
        %p551 = pneg %p276
        %p552 = pneg %p273
        %p553 = scmp.lt.s32.totalorder %s26, 1
        %s554 = scalar_select %p553, %s26, 1
        %s555 = scalar_lea.vmem %s10, %s554
        %p556 = pneg %p302
        %p557 = pneg %p299
        %p558 = scmp.lt.s32.totalorder %s26, 1
        %s559 = scalar_select %p558, %s26, 1
        %s560 = scalar_lea.vmem %s11, %s559
        %p561 = pneg %p328
        %p562 = pneg %p325
        %p563 = scmp.lt.s32.totalorder %s26, 1
        %s564 = scalar_select %p563, %s26, 1
        %s565 = scalar_lea.vmem %s12, %s564
        %p566 = pneg %p354
        %p567 = pneg %p351
        %p568 = pneg %p375
        %p569 = pneg %p372
        %p570 = scmp.lt.s32.totalorder %s26, 1
        %s571 = scalar_select %p570, %s26, 1
        %s572 = smul.addr %s571, 4
        %s573 = smul.addr %s572, 4
        %s574 = scalar_lea.vmem %s1, %s573
        %p575 = scmp.lt.s32.totalorder %s26, 1
        %s576 = scalar_select %p575, %s26, 1
        %s577 = scalar_lea.vmem %s2, %s576
        %p578 = scmp.lt.s32.totalorder %s26, 1
        %s579 = scalar_select %p578, %s26, 1
        %s580 = smul.addr %s579, 4
        %s581 = smul.addr %s580, 4
        %s582 = scalar_lea.vmem %s3, %s581
        %p583 = scmp.lt.s32.totalorder %s26, 1
        %s584 = scalar_select %p583, %s26, 1
        %s585 = scalar_lea.vmem %s4, %s584
        %p586 = scmp.lt.s32.totalorder %s26, 1
        %s587 = scalar_select %p586, %s26, 1
        %s588 = scalar_lea.vmem %s5, %s587
        %p589 = scmp.lt.s32.totalorder %s26, 1
        %s590 = scalar_select %p589, %s26, 1
        %s591 = scalar_lea.vmem %s6, %s590
        %p592 = scmp.lt.s32.totalorder %s26, 1
        %s593 = scalar_select %p592, %s26, 1
        %s594 = smul.addr %s593, 4
        %s595 = smul.addr %s594, 4
        %s596 = scalar_lea.vmem %s7, %s595
        %p597 = scmp.lt.s32.totalorder %s26, 1
        %s598 = scalar_select %p597, %s26, 1
        %s599 = scalar_lea.vmem %s8, %s598
        %p600 = scmp.lt.s32.totalorder %s26, 1
        %s601 = scalar_select %p600, %s26, 1
        %s602 = smul.addr %s601, 8
        %s603 = smul.addr %s602, 4
        %s604 = scalar_lea.vmem %s9, %s603
        %p605 = scmp.lt.s32.totalorder %s26, 1
        %s606 = scalar_select %p605, %s26, 1
        %s607 = scalar_lea.vmem %s10, %s606
        %p608 = scmp.lt.s32.totalorder %s26, 1
        %s609 = scalar_select %p608, %s26, 1
        %s610 = scalar_lea.vmem %s11, %s609
        %p611 = scmp.lt.s32.totalorder %s26, 1
        %s612 = scalar_select %p611, %s26, 1
        %s613 = scalar_lea.vmem %s12, %s612
        %p615 = scmp.eq.s32.totalorder %s26, 0
        // Predicated region
        $region77: #{tpu_custom_call.1} parent=71 // pred_check
          %p616 = pneg %p615
        $region78: #{tpu_custom_call.1} parent=71 // pred_check_branch
          %618 = sbr.rel (%p616) target = $region80
        $region79: #{tpu_custom_call.1} parent=71 // pred_region
          %v619 = vld [vmem:[#allocation2] sm:$0xff]
          %vm620 = vcmask 261120
          %621 = vst.msk [vmem:[#allocation5] sm:$0xff] %vm620, %v619
        $region80: #{tpu_custom_call.1} parent=71 // pred_fallthru
          _
        %v622 = vld [vmem:[#allocation5] sm:$0xff]
        %v623 = vpack.c.bf16 %v622, %v622
        %v624 = vld [vmem:[%s574] sm:$0xf]
        %v625 = vld [vmem:[%s574 + $0x4] sm:$0xf]
        %v626 = vld [vmem:[%s574 + $0x8] sm:$0xf]
        %v627 = vld [vmem:[%s574 + $0xc] sm:$0xf]
        %v628 = vld [vmem:[%s577] sm:$0x1]
        %v630 = vperm.slane %v628, 0
        %v636 = vunpack.c.l.b16 %v624
        %v637 = vunpack.c.l.b16 %v625
        %v638 = vunpack.c.l.b16 %v626
        %v639 = vunpack.c.l.b16 %v627
        %v640 = vpack.c.b16 %v637, %v636
        %v641 = vpack.c.b16 %v639, %v638
        %vm644 = vcmask 261120
        %v646 = vsel %vm644, %v623, 0
        %648 = vmatpush.bf16.msra.mxu0 0
        %649 = vmatpush.bf16.msra.mxu0 0
        %650 = vmatpush.bf16.msra.mxu0 0
        %651 = vmatpush.bf16.msra.mxu0 0
        %652 = vmatpush.bf16.msra.mxu0 0
        %653 = vmatpush.bf16.msra.mxu0 0
        %654 = vmatpush.bf16.msra.mxu0 %v641
        %655 = vmatpush.bf16.msra.mxu0 %v640
        %656 = vmatmul.bf16.gmra.mxu0 %v646
        %v657 = vpop.f32.mrf.mxu0
        %v658 = vadd.f32 %v630, %v657
        %v659 = vpop.f32.mrf.mxu0
        %660 = vdwg.mxu0
        %v661 = vmul.f32 %v658, 0.35355338
        %v662 = vpack.c.bf16 %v661, %v661
        %v663 = vpack.c.bf16 %v658, %v658
        %v664 = vlaneseq
        %v665 = vshrl.u32 %v664, 7
        %v666 = vlaneseq
        %v667 = vand.u32 %v666, 127
        %vm668 = vcmp.gt.s32.totalorder %v667, %v665
        %v669 = vsel %vm668, -1e+30, 0.0
        %v671 = vunpack.c.l.b16 %v663
        %v672 = vpack.c.b16 %v671, %v671
        %673 = vrot.lane.b32.xlu0 %v672, 96
        %v674 = vpop.permute.xlu0 %673
        %vm675 = vcmask 64512
        %v677 = vsel %vm675, %v662, 0
        %v680 = vsel %vm675, %v674, 0
        %682 = vmatpush.bf16.xpose.msra.mxu0 0
        %683 = vmatpush.bf16.xpose.msra.mxu0 0
        %684 = vmatpush.bf16.xpose.msra.mxu0 0
        %685 = vmatpush.bf16.xpose.msra.mxu0 0
        %686 = vmatpush.bf16.xpose.msra.mxu0 0
        %687 = vmatpush.bf16.xpose.msra.mxu0 0
        %688 = vmatpush.bf16.xpose.msra.mxu0 0
        %689 = vmatpush.bf16.xpose.msra.mxu0 %v680
        %690 = vmatmul.bf16.gmra.mxu0 %v677
        %v691 = vpop.f32.mrf.mxu0
        %v692 = vadd.f32 %v669, %v691
        %v693 = vpop.f32.mrf.mxu0
        %694 = vdwg.mxu0
        %v695 = vsel %vm675, %v692, -inf
        %696 = vmax.xlane.f32.xlu0 %v695
        %v697 = vpop.xlane.xlu0 %696
        %v698 = vsub.f32 %v692, %v697
        %v699 = vmul.f32 %v698, 1.442695
        %v700 = vpow.pop %v699
        %v701 = vsel %vm675, %v700, 0.0
        %702 = vadd.xlane.f32.xlu0 %v701
        %v703 = vpop.xlane.xlu0 %702
        %v704 = vrcp.pop %v703
        %v705 = vmul.f32 %v700, %v704
        %v706 = vpack.c.bf16 %v705, %v705
        %707 = vrot.lane.b32.xlu0 %v672, 64
        %v708 = vpop.permute.xlu0 %707
        %v710 = vsel %vm675, %v706, 0
        %vm712 = vcmask 1043456
        %v714 = vsel %vm712, %v708, 0
        %716 = vmatpush.bf16.msra.mxu0 0
        %717 = vmatpush.bf16.msra.mxu0 0
        %718 = vmatpush.bf16.msra.mxu0 0
        %719 = vmatpush.bf16.msra.mxu0 0
        %720 = vmatpush.bf16.msra.mxu0 0
        %721 = vmatpush.bf16.msra.mxu0 0
        %722 = vmatpush.bf16.msra.mxu0 0
        %723 = vmatpush.bf16.msra.mxu0 %v714
        %724 = vmatmul.bf16.gmra.mxu0 %v710
        %v725 = vpop.f32.mrf.mxu0
        %v726 = vadd.f32 0.0, %v725
        %v727 = vpop.f32.mrf.mxu0
        %728 = vdwg.mxu0
        %v730 = vunpack.c.l.b16 %v662
        %v731 = vpack.c.b16 %v730, %v730
        %732 = vrot.lane.b32.xlu0 %v731, 120
        %v733 = vpop.permute.xlu0 %732
        %734 = vrot.lane.b32.xlu0 %v672, 88
        %v735 = vpop.permute.xlu0 %734
        %v737 = vsel %vm675, %v733, 0
        %v740 = vsel %vm675, %v735, 0
        %742 = vmatpush.bf16.xpose.msra.mxu0 0
        %743 = vmatpush.bf16.xpose.msra.mxu0 0
        %744 = vmatpush.bf16.xpose.msra.mxu0 0
        %745 = vmatpush.bf16.xpose.msra.mxu0 0
        %746 = vmatpush.bf16.xpose.msra.mxu0 0
        %747 = vmatpush.bf16.xpose.msra.mxu0 0
        %748 = vmatpush.bf16.xpose.msra.mxu0 0
        %749 = vmatpush.bf16.xpose.msra.mxu0 %v740
        %750 = vmatmul.bf16.gmra.mxu0 %v737
        %v751 = vpop.f32.mrf.mxu0
        %v752 = vadd.f32 %v669, %v751
        %v753 = vpop.f32.mrf.mxu0
        %754 = vdwg.mxu0
        %v755 = vsel %vm675, %v752, -inf
        %756 = vmax.xlane.f32.xlu0 %v755
        %v757 = vpop.xlane.xlu0 %756
        %v758 = vsub.f32 %v752, %v757
        %v759 = vmul.f32 %v758, 1.442695
        %v760 = vpow.pop %v759
        %v761 = vsel %vm675, %v760, 0.0
        %762 = vadd.xlane.f32.xlu0 %v761
        %v763 = vpop.xlane.xlu0 %762
        %v764 = vrcp.pop %v763
        %v765 = vmul.f32 %v760, %v764
        %v766 = vpack.c.bf16 %v765, %v765
        %767 = vrot.lane.b32.xlu0 %v672, 56
        %v768 = vpop.permute.xlu0 %767
        %v770 = vsel %vm675, %v766, 0
        %v773 = vsel %vm712, %v768, 0
        %775 = vmatpush.bf16.msra.mxu0 0
        %776 = vmatpush.bf16.msra.mxu0 0
        %777 = vmatpush.bf16.msra.mxu0 0
        %778 = vmatpush.bf16.msra.mxu0 0
        %779 = vmatpush.bf16.msra.mxu0 0
        %780 = vmatpush.bf16.msra.mxu0 0
        %781 = vmatpush.bf16.msra.mxu0 0
        %782 = vmatpush.bf16.msra.mxu0 %v773
        %783 = vmatmul.bf16.gmra.mxu0 %v770
        %v784 = vpop.f32.mrf.mxu0
        %v785 = vadd.f32 0.0, %v784
        %v786 = vpop.f32.mrf.mxu0
        %787 = vdwg.mxu0
        %788 = vrot.lane.b32.xlu0 %v731, 112
        %v789 = vpop.permute.xlu0 %788
        %790 = vrot.lane.b32.xlu0 %v672, 80
        %v791 = vpop.permute.xlu0 %790
        %v793 = vsel %vm675, %v789, 0
        %v796 = vsel %vm675, %v791, 0
        %798 = vmatpush.bf16.xpose.msra.mxu0 0
        %799 = vmatpush.bf16.xpose.msra.mxu0 0
        %800 = vmatpush.bf16.xpose.msra.mxu0 0
        %801 = vmatpush.bf16.xpose.msra.mxu0 0
        %802 = vmatpush.bf16.xpose.msra.mxu0 0
        %803 = vmatpush.bf16.xpose.msra.mxu0 0
        %804 = vmatpush.bf16.xpose.msra.mxu0 0
        %805 = vmatpush.bf16.xpose.msra.mxu0 %v796
        %806 = vmatmul.bf16.gmra.mxu0 %v793
        %v807 = vpop.f32.mrf.mxu0
        %v808 = vadd.f32 %v669, %v807
        %v809 = vpop.f32.mrf.mxu0
        %810 = vdwg.mxu0
        %v811 = vsel %vm675, %v808, -inf
        %812 = vmax.xlane.f32.xlu0 %v811
        %v813 = vpop.xlane.xlu0 %812
        %v814 = vsub.f32 %v808, %v813
        %v815 = vmul.f32 %v814, 1.442695
        %v816 = vpow.pop %v815
        %v817 = vsel %vm675, %v816, 0.0
        %818 = vadd.xlane.f32.xlu0 %v817
        %v819 = vpop.xlane.xlu0 %818
        %v820 = vrcp.pop %v819
        %v821 = vmul.f32 %v816, %v820
        %v822 = vpack.c.bf16 %v821, %v821
        %823 = vrot.lane.b32.xlu0 %v672, 48
        %v824 = vpop.permute.xlu0 %823
        %v826 = vsel %vm675, %v822, 0
        %v829 = vsel %vm712, %v824, 0
        %831 = vmatpush.bf16.msra.mxu0 0
        %832 = vmatpush.bf16.msra.mxu0 0
        %833 = vmatpush.bf16.msra.mxu0 0
        %834 = vmatpush.bf16.msra.mxu0 0
        %835 = vmatpush.bf16.msra.mxu0 0
        %836 = vmatpush.bf16.msra.mxu0 0
        %837 = vmatpush.bf16.msra.mxu0 0
        %838 = vmatpush.bf16.msra.mxu0 %v829
        %839 = vmatmul.bf16.gmra.mxu0 %v826
        %v840 = vpop.f32.mrf.mxu0
        %v841 = vadd.f32 0.0, %v840
        %v842 = vpop.f32.mrf.mxu0
        %843 = vdwg.mxu0
        %844 = vrot.lane.b32.xlu0 %v731, 104
        %v845 = vpop.permute.xlu0 %844
        %846 = vrot.lane.b32.xlu0 %v672, 72
        %v847 = vpop.permute.xlu0 %846
        %v849 = vsel %vm675, %v845, 0
        %v852 = vsel %vm675, %v847, 0
        %854 = vmatpush.bf16.xpose.msra.mxu0 0
        %855 = vmatpush.bf16.xpose.msra.mxu0 0
        %856 = vmatpush.bf16.xpose.msra.mxu0 0
        %857 = vmatpush.bf16.xpose.msra.mxu0 0
        %858 = vmatpush.bf16.xpose.msra.mxu0 0
        %859 = vmatpush.bf16.xpose.msra.mxu0 0
        %860 = vmatpush.bf16.xpose.msra.mxu0 0
        %861 = vmatpush.bf16.xpose.msra.mxu0 %v852
        %862 = vmatmul.bf16.gmra.mxu0 %v849
        %v863 = vpop.f32.mrf.mxu0
        %v864 = vadd.f32 %v669, %v863
        %v865 = vpop.f32.mrf.mxu0
        %866 = vdwg.mxu0
        %v867 = vsel %vm675, %v864, -inf
        %868 = vmax.xlane.f32.xlu0 %v867
        %v869 = vpop.xlane.xlu0 %868
        %v870 = vsub.f32 %v864, %v869
        %v871 = vmul.f32 %v870, 1.442695
        %v872 = vpow.pop %v871
        %v873 = vsel %vm675, %v872, 0.0
        %874 = vadd.xlane.f32.xlu0 %v873
        %v875 = vpop.xlane.xlu0 %874
        %v876 = vrcp.pop %v875
        %v877 = vmul.f32 %v872, %v876
        %v878 = vpack.c.bf16 %v877, %v877
        %879 = vrot.lane.b32.xlu0 %v672, 40
        %v880 = vpop.permute.xlu0 %879
        %v882 = vsel %vm675, %v878, 0
        %v885 = vsel %vm712, %v880, 0
        %887 = vmatpush.bf16.msra.mxu0 0
        %888 = vmatpush.bf16.msra.mxu0 0
        %889 = vmatpush.bf16.msra.mxu0 0
        %890 = vmatpush.bf16.msra.mxu0 0
        %891 = vmatpush.bf16.msra.mxu0 0
        %892 = vmatpush.bf16.msra.mxu0 0
        %893 = vmatpush.bf16.msra.mxu0 0
        %894 = vmatpush.bf16.msra.mxu0 %v885
        %895 = vmatmul.bf16.gmra.mxu0 %v882
        %v896 = vpop.f32.mrf.mxu0
        %v897 = vadd.f32 0.0, %v896
        %v898 = vpop.f32.mrf.mxu0
        %899 = vdwg.mxu0
        %901 = vrot.lane.b32.xlu0 %v785, 8
        %v902 = vpop.permute.xlu0 %901
        %905 = vrot.lane.b32.xlu0 %v841, 16
        %v906 = vpop.permute.xlu0 %905
        %909 = vrot.lane.b32.xlu0 %v897, 24
        %v910 = vpop.permute.xlu0 %909
        %v912 = vsel %vm675, %v726, %v902
        %vm913 = vcmask 130048
        %v914 = vsel %vm913, %v912, %v906
        %vm915 = vcmask 195584
        %v916 = vsel %vm915, %v914, %v910
        %v917 = vpack.c.bf16 %v916, %v916
        %v918 = vld [vmem:[%s582] sm:$0xf]
        %v919 = vld [vmem:[%s582 + $0x4] sm:$0xf]
        %v920 = vld [vmem:[%s582 + $0x8] sm:$0xf]
        %v921 = vld [vmem:[%s582 + $0xc] sm:$0xf]
        %v922 = vld [vmem:[%s585] sm:$0x1]
        %v924 = vperm.slane %v922, 0
        %v930 = vunpack.c.l.b16 %v918
        %v931 = vunpack.c.l.b16 %v919
        %v932 = vunpack.c.l.b16 %v920
        %v933 = vunpack.c.l.b16 %v921
        %v934 = vpack.c.b16 %v931, %v930
        %v935 = vpack.c.b16 %v933, %v932
        %v939 = vsel %vm644, %v917, 0
        %941 = vmatpush.bf16.msra.mxu0 0
        %942 = vmatpush.bf16.msra.mxu0 0
        %943 = vmatpush.bf16.msra.mxu0 0
        %944 = vmatpush.bf16.msra.mxu0 0
        %945 = vmatpush.bf16.msra.mxu0 0
        %946 = vmatpush.bf16.msra.mxu0 0
        %947 = vmatpush.bf16.msra.mxu0 %v935
        %948 = vmatpush.bf16.msra.mxu0 %v934
        %949 = vmatmul.bf16.gmra.mxu0 %v939
        %v950 = vpop.f32.mrf.mxu0
        %v951 = vadd.f32 %v924, %v950
        %v952 = vpop.f32.mrf.mxu0
        %953 = vdwg.mxu0
        %v954 = vadd.f32 %v622, %v951
        %v955 = vld [vmem:[%s588] sm:$0x1]
        %v956 = vld [vmem:[%s591] sm:$0x1]
        %v957 = vsel %vm644, %v954, 0.0
        %958 = vadd.xlane.f32.xlu0 %v957
        %v959 = vpop.xlane.xlu0 %958
        %v960 = vrcp.pop 32.0
        %v961 = vmul.f32 32.0, %v960
        %v962 = vsub.f32 1.0, %v961
        %v963 = vmul.f32 %v960, %v962
        %v964 = vadd.f32 %v960, %v963
        %vm965 = vweird.f32 %v960
        %v966 = vsel %vm965, %v960, %v964
        %v967 = vmul.f32 %v959, %v966
        %v968 = vsub.f32 %v954, %v967
        %v969 = vmul.f32 %v968, %v968
        %v970 = vsel %vm644, %v969, 0.0
        %971 = vadd.xlane.f32.xlu0 %v970
        %v972 = vpop.xlane.xlu0 %971
        %v973 = vmul.f32 %v972, %v966
        %v974 = vadd.f32 %v973, 1e-05
        %v975 = vrsqrt.pop %v974
        %v976 = vmul.f32 %v975, %v974
        %v977 = vmul.f32 %v976, %v975
        %v978 = vmul.f32 0.5, %v977
        %v979 = vsub.f32 1.5, %v978
        %v980 = vmul.f32 %v975, %v979
        %vm981 = vweird.f32 %v974
        %vm982 = vweird.f32 %v975
        %vm983 = vmor %vm981, %vm982
        %v984 = vsel %vm983, %v975, %v980
        %v985 = vmul.f32 %v968, %v984
        %v987 = vperm.slane %v955, 0
        %v989 = vmul.f32 %v985, %v987
        %v991 = vperm.slane %v956, 0
        %v993 = vadd.f32 %v989, %v991
        %v994 = vpack.c.bf16 %v993, %v993
        %v995 = vld [vmem:[%s596] sm:$0xf]
        %v996 = vld [vmem:[%s596 + $0x4] sm:$0xf]
        %v997 = vld [vmem:[%s596 + $0x8] sm:$0xf]
        %v998 = vld [vmem:[%s596 + $0xc] sm:$0xf]
        %v999 = vld [vmem:[%s599] sm:$0x1]
        %v1001 = vperm.slane %v999, 0
        %v1007 = vunpack.c.l.b16 %v995
        %v1008 = vunpack.c.l.b16 %v996
        %v1009 = vunpack.c.l.b16 %v997
        %v1010 = vunpack.c.l.b16 %v998
        %v1011 = vpack.c.b16 %v1008, %v1007
        %v1012 = vpack.c.b16 %v1010, %v1009
        %v1016 = vsel %vm644, %v994, 0
        %1018 = vmatpush.bf16.msra.mxu0 0
        %1019 = vmatpush.bf16.msra.mxu0 0
        %1020 = vmatpush.bf16.msra.mxu0 0
        %1021 = vmatpush.bf16.msra.mxu0 0
        %1022 = vmatpush.bf16.msra.mxu0 0
        %1023 = vmatpush.bf16.msra.mxu0 0
        %1024 = vmatpush.bf16.msra.mxu0 %v1012
        %1025 = vmatpush.bf16.msra.mxu0 %v1011
        %1026 = vmatmul.bf16.gmra.mxu0 %v1016
        %v1027 = vpop.f32.mrf.mxu0
        %v1028 = vadd.f32 %v1001, %v1027
        %v1029 = vpop.f32.mrf.mxu0
        %1030 = vdwg.mxu0
        %v1031 = vmax.f32 %v1028, 0.0
        %v1032 = vpack.c.bf16 %v1031, %v1031
        %v1033 = vld [vmem:[%s604] sm:$0xf]
        %v1034 = vld [vmem:[%s604 + $0x4] sm:$0xf]
        %v1035 = vld [vmem:[%s604 + $0x8] sm:$0xf]
        %v1036 = vld [vmem:[%s604 + $0xc] sm:$0xf]
        %v1037 = vld [vmem:[%s604 + $0x10] sm:$0xf]
        %v1038 = vld [vmem:[%s604 + $0x14] sm:$0xf]
        %v1039 = vld [vmem:[%s604 + $0x18] sm:$0xf]
        %v1040 = vld [vmem:[%s604 + $0x1c] sm:$0xf]
        %v1041 = vld [vmem:[%s607] sm:$0x1]
        %v1043 = vperm.slane %v1041, 0
        %v1053 = vunpack.c.l.b16 %v1033
        %v1054 = vunpack.c.l.b16 %v1034
        %v1055 = vunpack.c.l.b16 %v1035
        %v1056 = vunpack.c.l.b16 %v1036
        %v1057 = vunpack.c.l.b16 %v1037
        %v1058 = vunpack.c.l.b16 %v1038
        %v1059 = vunpack.c.l.b16 %v1039
        %v1060 = vunpack.c.l.b16 %v1040
        %v1061 = vpack.c.b16 %v1054, %v1053
        %v1062 = vpack.c.b16 %v1056, %v1055
        %v1063 = vpack.c.b16 %v1058, %v1057
        %v1064 = vpack.c.b16 %v1060, %v1059
        %vm1069 = vcmask 523264
        %v1071 = vsel %vm1069, %v1032, 0
        %1073 = vmatpush.bf16.msra.mxu0 0
        %1074 = vmatpush.bf16.msra.mxu0 0
        %1075 = vmatpush.bf16.msra.mxu0 0
        %1076 = vmatpush.bf16.msra.mxu0 0
        %1077 = vmatpush.bf16.msra.mxu0 %v1064
        %1078 = vmatpush.bf16.msra.mxu0 %v1063
        %1079 = vmatpush.bf16.msra.mxu0 %v1062
        %1080 = vmatpush.bf16.msra.mxu0 %v1061
        %1081 = vmatmul.bf16.gmra.mxu0 %v1071
        %v1082 = vpop.f32.mrf.mxu0
        %v1083 = vadd.f32 %v1043, %v1082
        %v1084 = vpop.f32.mrf.mxu0
        %1085 = vdwg.mxu0
        %v1086 = vadd.f32 %v993, %v1083
        %v1087 = vld [vmem:[%s610] sm:$0x1]
        %v1088 = vld [vmem:[%s613] sm:$0x1]
        %v1089 = vsel %vm644, %v1086, 0.0
        %1090 = vadd.xlane.f32.xlu0 %v1089
        %v1091 = vpop.xlane.xlu0 %1090
        %v1092 = vmul.f32 %v1091, %v966
        %v1093 = vsub.f32 %v1086, %v1092
        %v1094 = vmul.f32 %v1093, %v1093
        %v1095 = vsel %vm644, %v1094, 0.0
        %1096 = vadd.xlane.f32.xlu0 %v1095
        %v1097 = vpop.xlane.xlu0 %1096
        %v1098 = vmul.f32 %v1097, %v966
        %v1099 = vadd.f32 %v1098, 1e-05
        %v1100 = vrsqrt.pop %v1099
        %v1101 = vmul.f32 %v1100, %v1099
        %v1102 = vmul.f32 %v1101, %v1100
        %v1103 = vmul.f32 0.5, %v1102
        %v1104 = vsub.f32 1.5, %v1103
        %v1105 = vmul.f32 %v1100, %v1104
        %vm1106 = vweird.f32 %v1099
        %vm1107 = vweird.f32 %v1100
        %vm1108 = vmor %vm1106, %vm1107
        %v1109 = vsel %vm1108, %v1100, %v1105
        %v1110 = vmul.f32 %v1093, %v1109
        %v1112 = vperm.slane %v1087, 0
        %v1114 = vmul.f32 %v1110, %v1112
        %v1116 = vperm.slane %v1088, 0
        %v1118 = vadd.f32 %v1114, %v1116
        %1119 = vst.msk [vmem:[#allocation5] sm:$0xff] %vm644, %v1118
        // Predicated region
        $region81: #{tpu_custom_call.1} parent=71 // pred_check
          %p1120 = pneg %p372
        $region82: #{tpu_custom_call.1} parent=71 // pred_check_branch
          %1122 = sbr.rel (%p1120) target = $region84
        $region83: #{tpu_custom_call.1} parent=71 // pred_region
          %1124 = vsyncadd [#allocation4], 0
          %s1126 = sshll.u32 [#allocation5], 4
          %s1127 = int_to_ptr.vmem [resolvable:$true] %s1126
          %s1128 = sshll.u32 %s13, 4
          %s1129 = int_to_ptr.hbm [resolvable:$true] %s1128
          %1131 = dma.vmem_to_hbm [thread:$0]  %s1127, 128, %s1129, [#allocation4]
        $region84: #{tpu_custom_call.1} parent=71 // pred_fallthru
          _
        // Predicated region
        $region85: #{tpu_custom_call.1} parent=71 // pred_check
          %p1132 = pneg %p372
        $region86: #{tpu_custom_call.1} parent=71 // pred_check_branch
          %1134 = sbr.rel (%p1132) target = $region88
        $region87: #{tpu_custom_call.1} parent=71 // pred_region
          %1136 = dma.done [#allocation4], 128
        $region88: #{tpu_custom_call.1} parent=71 // pred_fallthru
          _
      $region72: #{tpu_custom_call.1} parent=5 // pred_fallthru
        _
      %p1137 = scmp.le.s32.totalorder 2, %s21
      // Predicated region
      $region89: #{tpu_custom_call.1} parent=5 // pred_check
        %p1138 = pneg %p1137
      $region90: #{tpu_custom_call.1} parent=5 // pred_check_branch
        %1140 = sbr.rel (%p1138) target = $region92
      $region91: #{tpu_custom_call.1} parent=5 // pred_region
        %s1141 = ssub.s32 %s21, 2
      $region92: #{tpu_custom_call.1} parent=5 // pred_fallthru
        _
    $region6: #{tpu_custom_call.1} parent=1 // loop_footer
      %s25 = sadd.s32 1, %s21
    $region7: #{tpu_custom_call.1} parent=1 // loop_footer_branch
      %20 = sbr.rel target = $region3
    $region8: #{tpu_custom_call.1} parent=1 // loop_exit
      _
    %1142 = vsyncpa [#allocation3], 1
    %s1143 = scalar_lea.sflag [#allocation3], 1
    %1144 = vsyncpa %s1143, 1
    %1145 = vsyncpa [#allocation4], 1
    %s1146 = scalar_lea.sflag [#allocation4], 1
    %1147 = vsyncpa %s1146, 1

</llo_original>
